<compile_context>
chip_gen: v7x
topology: tpu7x:2x2x1
jax: 0.10.0
libtpu: 0.0.40
codegen_flags: <defaults>
</compile_context>

<pallas_src>
import jax
import jax.numpy as jnp
from jax.experimental import pallas as pl
from jax.experimental.pallas import tpu as pltpu

EPS = 1e-5
TAPS = tuple((kh, kw) for kh in range(3) for kw in range(3))  # t = kh*3 + kw


def _make_kernel(N, D, H, W, cpad):
    S = H * W
    T = N * D * S
    cnt1 = float(N * D * (H - 2) * (W - 2))   # valid positions after conv1
    cnt2 = float(N * D * (H - 4) * (W - 4))   # valid positions after conv2

    def conv_bn_relu(act, w, gamma, beta, mask, count, p_ref):
        # ---- im2col via lane rolls (XLU) into the VMEM scratch ------------
        # p[t*cpad + c, s] = act[c, (s + kh*W + kw) mod T]; the wrap-around
        # only lands in columns the valid-mask excludes.
        for t, (kh, kw) in enumerate(TAPS):
            off = kh * W + kw
            rolled = act if off == 0 else pltpu.roll(act, T - off, 1)
            p_ref[t * cpad:(t + 1) * cpad, :] = rolled
        # ---- contraction on the MXU (one matmul per conv) -----------------
        y = jnp.dot(w, p_ref[...], preferred_element_type=jnp.float32)
        # ---- training-mode BatchNorm + ReLU, fused to one scale/shift ------
        ym = y * mask                                   # mask out invalid cols
        mean = jnp.sum(ym, axis=1, keepdims=True) * (1.0 / count)
        ex2 = jnp.sum(ym * y, axis=1, keepdims=True) * (1.0 / count)
        var = ex2 - mean * mean                         # biased batch variance
        scale = gamma * jax.lax.rsqrt(var + EPS)
        shift = beta - mean * scale
        return jnp.maximum(y * scale + shift, 0.0)

    def kernel(x_ref, w1_ref, g1_ref, b1_ref, w2_ref, g2_ref, b2_ref,
               m1_ref, m2_ref, o_ref, p_ref):
        y1 = conv_bn_relu(x_ref[...], w1_ref[...], g1_ref[...], b1_ref[...],
                          m1_ref[...], cnt1, p_ref)
        o_ref[...] = conv_bn_relu(y1, w2_ref[...], g2_ref[...], b2_ref[...],
                                  m2_ref[...], cnt2, p_ref)
        # TODO(synk): BatchNorm running_mean/running_var buffer updates (a
        # training side effect that does not affect the returned tensor) are
        # not replicated.

    return kernel, T


def _pack_weight(w, cpad):
    """(Cout, Cin, 1, 3, 3) -> (cpad, 9*cpad), tap-major, channels zero-padded."""
    cout, cin = w.shape[0], w.shape[1]
    wk = jnp.transpose(w[:, :, 0, :, :], (0, 2, 3, 1))        # (Cout, kh, kw, Cin)
    wk = jnp.pad(wk, ((0, cpad - cout), (0, 0), (0, 0), (0, cpad - cin)))
    return wk.reshape(cpad, 9 * cpad).astype(jnp.float32)     # col = t*cpad + ci


def _col(v, cpad):
    return jnp.pad(v.reshape(-1, 1),
                   ((0, cpad - v.shape[0]), (0, 0))).astype(jnp.float32)


def _valid_mask(N, D, H, W, ho, wo):
    m = (jnp.arange(H)[:, None] < ho) & (jnp.arange(W)[None, :] < wo)
    m = jnp.broadcast_to(m[None], (N * D, H, W)).astype(jnp.float32)
    return m.reshape(1, N * D * H * W)


@jax.jit
def block_forward(x_ncdhw, params):
    """x: (N, Cin, D, H, W) f32 -> (N, Cout, D, H-4, W-4) f32."""
    (w1, b1, g1, be1, w2, b2, g2, be2) = params
    del b1, b2  # conv bias is exactly cancelled by BN's batch-mean subtraction
    N, Cin, D, H, W = x_ncdhw.shape
    Cout = w1.shape[0]
    cpad = max(8, -(-max(Cin, Cout) // 8) * 8)   # channel blocks of 8 sublanes
    kernel, T = _make_kernel(N, D, H, W, cpad)

    # channels -> sublanes, flattened (N, D, H, W) -> lanes (lane-dense slabs)
    x_cf = jnp.transpose(x_ncdhw, (1, 0, 2, 3, 4)).reshape(Cin, T)
    x_cf = jnp.pad(x_cf, ((0, cpad - Cin), (0, 0))).astype(jnp.float32)

    m1 = _valid_mask(N, D, H, W, H - 2, W - 2)
    m2 = _valid_mask(N, D, H, W, H - 4, W - 4)

    vmem = pl.BlockSpec(memory_space=pltpu.MemorySpace.VMEM)
    out_flat = pl.pallas_call(
        kernel,
        out_shape=jax.ShapeDtypeStruct((cpad, T), jnp.float32),
        in_specs=[vmem] * 9,
        out_specs=vmem,
        scratch_shapes=[pltpu.VMEM((9 * cpad, T), jnp.float32)],
    )(x_cf, _pack_weight(w1, cpad), _col(g1, cpad), _col(be1, cpad),
      _pack_weight(w2, cpad), _col(g2, cpad), _col(be2, cpad), m1, m2)

    # Un-flatten / strip the never-valid columns in the wrapper (tens of KB).
    out = out_flat[:Cout].reshape(Cout, N, D, H, W)[:, :, :, :H - 4, :W - 4]
    return jnp.transpose(out, (1, 0, 2, 3, 4))     # back to NCDHW


# ---------------------------- pure-JAX reference ----------------------------
def _ref_block(x, params):
    (w1, b1, g1, be1, w2, b2, g2, be2) = params

    def conv(x, w, b):
        y = jax.lax.conv_general_dilated(
            x, w, window_strides=(1, 1, 1), padding="VALID",
            dimension_numbers=("NCDHW", "OIDHW", "NCDHW"),
            precision=jax.lax.Precision.HIGHEST)
        return y + b.reshape(1, -1, 1, 1, 1)

    def bn_relu(y, g, be):
        mean = jnp.mean(y, axis=(0, 2, 3, 4), keepdims=True)
        var = jnp.mean((y - mean) ** 2, axis=(0, 2, 3, 4), keepdims=True)
        yn = (y - mean) / jnp.sqrt(var + EPS)
        return jnp.maximum(yn * g.reshape(1, -1, 1, 1, 1)
                           + be.reshape(1, -1, 1, 1, 1), 0.0)

    y = bn_relu(conv(x, w1, b1), g1, be1)
    return bn_relu(conv(y, w2, b2), g2, be2)


if __name__ == "__main__":
    # Small shapes consistent with the module: N=2, Cin=4, Cout=8, D=3, H=W=16.
    N, Cin, Cout, D, H, W = 2, 4, 8, 3, 16, 16
    key = jax.random.PRNGKey(0)
    ks = jax.random.split(key, 9)

    x = jax.random.normal(ks[0], (N, Cin, D, H, W), jnp.float32)
    w1 = 0.1 * jax.random.normal(ks[1], (Cout, Cin, 1, 3, 3), jnp.float32)
    b1 = 0.1 * jax.random.normal(ks[2], (Cout,), jnp.float32)
    g1 = 1.0 + 0.1 * jax.random.normal(ks[3], (Cout,), jnp.float32)
    be1 = 0.1 * jax.random.normal(ks[4], (Cout,), jnp.float32)
    w2 = 0.1 * jax.random.normal(ks[5], (Cout, Cout, 1, 3, 3), jnp.float32)
    b2 = 0.1 * jax.random.normal(ks[6], (Cout,), jnp.float32)
    g2 = 1.0 + 0.1 * jax.random.normal(ks[7], (Cout,), jnp.float32)
    be2 = 0.1 * jax.random.normal(ks[8], (Cout,), jnp.float32)
    params = (w1, b1, g1, be1, w2, b2, g2, be2)

    out = jax.block_until_ready(block_forward(x, params))
    assert out.shape == (N, Cout, D, H - 4, W - 4), out.shape

    ref = jax.block_until_ready(_ref_block(x, params))
    # Tolerance leaves margin for reduced-precision MXU accumulation paths;
    # with a full-f32 MXU path the agreement is ~1e-5.
    assert jnp.allclose(out, ref, atol=2e-2, rtol=2e-2), (
        float(jnp.max(jnp.abs(out - ref))))

    print("KERNEL_OK")
</pallas_src>

<mosaic_0001>
module attributes {stable_mosaic.version = 11 : i64} {
  func.func @kernel(%arg0: memref<8x1536xf32, #tpu.memory_space<vmem>>, %arg1: memref<8x72xf32, #tpu.memory_space<vmem>>, %arg2: memref<8x1xf32, #tpu.memory_space<vmem>>, %arg3: memref<8x1xf32, #tpu.memory_space<vmem>>, %arg4: memref<8x72xf32, #tpu.memory_space<vmem>>, %arg5: memref<8x1xf32, #tpu.memory_space<vmem>>, %arg6: memref<8x1xf32, #tpu.memory_space<vmem>>, %arg7: memref<1x1536xf32, #tpu.memory_space<vmem>>, %arg8: memref<1x1536xf32, #tpu.memory_space<vmem>>, %arg9: memref<8x1536xf32, #tpu.memory_space<vmem>>, %arg10: memref<72x1536xf32, #tpu.memory_space<vmem>>) attributes {dimension_semantics = [], scalar_prefetch = 0 : i64, scratch_operands = 1 : i64, tpu.core_type = #tpu.core_type<tc>} {
    %c0 = arith.constant 0 : index
    %c0_0 = arith.constant 0 : index
    %0 = vector.load %arg0[%c0, %c0_0] : memref<8x1536xf32, #tpu.memory_space<vmem>>, vector<8x1536xf32>
    %c0_1 = arith.constant 0 : index
    %c0_2 = arith.constant 0 : index
    %1 = vector.load %arg1[%c0_1, %c0_2] : memref<8x72xf32, #tpu.memory_space<vmem>>, vector<8x72xf32>
    %c0_3 = arith.constant 0 : index
    %c0_4 = arith.constant 0 : index
    %2 = vector.load %arg2[%c0_3, %c0_4] : memref<8x1xf32, #tpu.memory_space<vmem>>, vector<8x1xf32>
    %c0_5 = arith.constant 0 : index
    %c0_6 = arith.constant 0 : index
    %3 = vector.load %arg3[%c0_5, %c0_6] : memref<8x1xf32, #tpu.memory_space<vmem>>, vector<8x1xf32>
    %c0_7 = arith.constant 0 : index
    %c0_8 = arith.constant 0 : index
    %4 = vector.load %arg7[%c0_7, %c0_8] : memref<1x1536xf32, #tpu.memory_space<vmem>>, vector<1x1536xf32>
    %c0_9 = arith.constant 0 : index
    %c0_10 = arith.constant 0 : index
    %5 = vector.load %arg10[%c0_9, %c0_10] : memref<72x1536xf32, #tpu.memory_space<vmem>>, vector<8x1536xf32>
    tpu.vector_store %arg10[%c0_9, %c0_10], %0 {strides = array<i32>} : memref<72x1536xf32, #tpu.memory_space<vmem>>, vector<8x1536xf32>,
    %c1535_i32 = arith.constant 1535 : i32
    %6 = tpu.dynamic_rotate %0 by %c1535_i32 dim 1 : vector<8x1536xf32>, i32 -> vector<8x1536xf32>
    %c8 = arith.constant 8 : index
    %c0_11 = arith.constant 0 : index
    %7 = vector.load %arg10[%c8, %c0_11] : memref<72x1536xf32, #tpu.memory_space<vmem>>, vector<8x1536xf32>
    tpu.vector_store %arg10[%c8, %c0_11], %6 {strides = array<i32>} : memref<72x1536xf32, #tpu.memory_space<vmem>>, vector<8x1536xf32>,
    %c1534_i32 = arith.constant 1534 : i32
    %8 = tpu.dynamic_rotate %0 by %c1534_i32 dim 1 : vector<8x1536xf32>, i32 -> vector<8x1536xf32>
    %c16 = arith.constant 16 : index
    %c0_12 = arith.constant 0 : index
    %9 = vector.load %arg10[%c16, %c0_12] : memref<72x1536xf32, #tpu.memory_space<vmem>>, vector<8x1536xf32>
    tpu.vector_store %arg10[%c16, %c0_12], %8 {strides = array<i32>} : memref<72x1536xf32, #tpu.memory_space<vmem>>, vector<8x1536xf32>,
    %c1520_i32 = arith.constant 1520 : i32
    %10 = tpu.dynamic_rotate %0 by %c1520_i32 dim 1 : vector<8x1536xf32>, i32 -> vector<8x1536xf32>
    %c24 = arith.constant 24 : index
    %c0_13 = arith.constant 0 : index
    %11 = vector.load %arg10[%c24, %c0_13] : memref<72x1536xf32, #tpu.memory_space<vmem>>, vector<8x1536xf32>
    tpu.vector_store %arg10[%c24, %c0_13], %10 {strides = array<i32>} : memref<72x1536xf32, #tpu.memory_space<vmem>>, vector<8x1536xf32>,
    %c1519_i32 = arith.constant 1519 : i32
    %12 = tpu.dynamic_rotate %0 by %c1519_i32 dim 1 : vector<8x1536xf32>, i32 -> vector<8x1536xf32>
    %c32 = arith.constant 32 : index
    %c0_14 = arith.constant 0 : index
    %13 = vector.load %arg10[%c32, %c0_14] : memref<72x1536xf32, #tpu.memory_space<vmem>>, vector<8x1536xf32>
    tpu.vector_store %arg10[%c32, %c0_14], %12 {strides = array<i32>} : memref<72x1536xf32, #tpu.memory_space<vmem>>, vector<8x1536xf32>,
    %c1518_i32 = arith.constant 1518 : i32
    %14 = tpu.dynamic_rotate %0 by %c1518_i32 dim 1 : vector<8x1536xf32>, i32 -> vector<8x1536xf32>
    %c40 = arith.constant 40 : index
    %c0_15 = arith.constant 0 : index
    %15 = vector.load %arg10[%c40, %c0_15] : memref<72x1536xf32, #tpu.memory_space<vmem>>, vector<8x1536xf32>
    tpu.vector_store %arg10[%c40, %c0_15], %14 {strides = array<i32>} : memref<72x1536xf32, #tpu.memory_space<vmem>>, vector<8x1536xf32>,
    %c1504_i32 = arith.constant 1504 : i32
    %16 = tpu.dynamic_rotate %0 by %c1504_i32 dim 1 : vector<8x1536xf32>, i32 -> vector<8x1536xf32>
    %c48 = arith.constant 48 : index
    %c0_16 = arith.constant 0 : index
    %17 = vector.load %arg10[%c48, %c0_16] : memref<72x1536xf32, #tpu.memory_space<vmem>>, vector<8x1536xf32>
    tpu.vector_store %arg10[%c48, %c0_16], %16 {strides = array<i32>} : memref<72x1536xf32, #tpu.memory_space<vmem>>, vector<8x1536xf32>,
    %c1503_i32 = arith.constant 1503 : i32
    %18 = tpu.dynamic_rotate %0 by %c1503_i32 dim 1 : vector<8x1536xf32>, i32 -> vector<8x1536xf32>
    %c56 = arith.constant 56 : index
    %c0_17 = arith.constant 0 : index
    %19 = vector.load %arg10[%c56, %c0_17] : memref<72x1536xf32, #tpu.memory_space<vmem>>, vector<8x1536xf32>
    tpu.vector_store %arg10[%c56, %c0_17], %18 {strides = array<i32>} : memref<72x1536xf32, #tpu.memory_space<vmem>>, vector<8x1536xf32>,
    %c1502_i32 = arith.constant 1502 : i32
    %20 = tpu.dynamic_rotate %0 by %c1502_i32 dim 1 : vector<8x1536xf32>, i32 -> vector<8x1536xf32>
    %c64 = arith.constant 64 : index
    %c0_18 = arith.constant 0 : index
    %21 = vector.load %arg10[%c64, %c0_18] : memref<72x1536xf32, #tpu.memory_space<vmem>>, vector<8x1536xf32>
    tpu.vector_store %arg10[%c64, %c0_18], %20 {strides = array<i32>} : memref<72x1536xf32, #tpu.memory_space<vmem>>, vector<8x1536xf32>,
    %c0_19 = arith.constant 0 : index
    %c0_20 = arith.constant 0 : index
    %22 = vector.load %arg10[%c0_19, %c0_20] : memref<72x1536xf32, #tpu.memory_space<vmem>>, vector<72x1536xf32>
    %cst = arith.constant dense<0.000000e+00> : vector<8x1536xf32>
    %23 = tpu.matmul %1, %22, %cst {dimension_numbers = #tpu.dot_dimension_numbers<[1], [0], [0], [1], [0, 0, 1, 1], [], []>} : vector<8x72xf32>, vector<72x1536xf32>, vector<8x1536xf32> -> vector<8x1536xf32>
    %24 = vector.broadcast %4 : vector<1x1536xf32> to vector<8x1536xf32>
    %25 = arith.mulf %23, %24 : vector<8x1536xf32>
    %cst_21 = arith.constant dense<0.000000e+00> : vector<8xf32>
    %26 = vector.multi_reduction <add>, %25, %cst_21 [1] : vector<8x1536xf32> to vector<8xf32>
    %27 = vector.shape_cast %26 : vector<8xf32> to vector<8x1xf32>
    %cst_22 = arith.constant 8.50340118E-4 : f32
    %28 = vector.broadcast %cst_22 : f32 to vector<8x1xf32>
    %29 = arith.mulf %27, %28 : vector<8x1xf32>
    %30 = arith.mulf %25, %23 : vector<8x1536xf32>
    %cst_23 = arith.constant dense<0.000000e+00> : vector<8xf32>
    %31 = vector.multi_reduction <add>, %30, %cst_23 [1] : vector<8x1536xf32> to vector<8xf32>
    %32 = vector.shape_cast %31 : vector<8xf32> to vector<8x1xf32>
    %cst_24 = arith.constant 8.50340118E-4 : f32
    %33 = vector.broadcast %cst_24 : f32 to vector<8x1xf32>
    %34 = arith.mulf %32, %33 : vector<8x1xf32>
    %35 = arith.mulf %29, %29 : vector<8x1xf32>
    %36 = arith.subf %34, %35 : vector<8x1xf32>
    %cst_25 = arith.constant 9.99999974E-6 : f32
    %37 = vector.broadcast %cst_25 : f32 to vector<8x1xf32>
    %38 = arith.addf %36, %37 : vector<8x1xf32>
    %39 = math.rsqrt %38 : vector<8x1xf32>
    %40 = arith.mulf %2, %39 : vector<8x1xf32>
    %41 = arith.mulf %29, %40 : vector<8x1xf32>
    %42 = arith.subf %3, %41 : vector<8x1xf32>
    %43 = vector.broadcast %40 : vector<8x1xf32> to vector<8x1536xf32>
    %44 = arith.mulf %23, %43 : vector<8x1536xf32>
    %45 = vector.broadcast %42 : vector<8x1xf32> to vector<8x1536xf32>
    %46 = arith.addf %44, %45 : vector<8x1536xf32>
    %cst_26 = arith.constant 0.000000e+00 : f32
    %47 = vector.broadcast %cst_26 : f32 to vector<8x1536xf32>
    %48 = arith.maximumf %46, %47 : vector<8x1536xf32>
    %c0_27 = arith.constant 0 : index
    %c0_28 = arith.constant 0 : index
    %49 = vector.load %arg4[%c0_27, %c0_28] : memref<8x72xf32, #tpu.memory_space<vmem>>, vector<8x72xf32>
    %c0_29 = arith.constant 0 : index
    %c0_30 = arith.constant 0 : index
    %50 = vector.load %arg5[%c0_29, %c0_30] : memref<8x1xf32, #tpu.memory_space<vmem>>, vector<8x1xf32>
    %c0_31 = arith.constant 0 : index
    %c0_32 = arith.constant 0 : index
    %51 = vector.load %arg6[%c0_31, %c0_32] : memref<8x1xf32, #tpu.memory_space<vmem>>, vector<8x1xf32>
    %c0_33 = arith.constant 0 : index
    %c0_34 = arith.constant 0 : index
    %52 = vector.load %arg8[%c0_33, %c0_34] : memref<1x1536xf32, #tpu.memory_space<vmem>>, vector<1x1536xf32>
    %c0_35 = arith.constant 0 : index
    %c0_36 = arith.constant 0 : index
    %53 = vector.load %arg10[%c0_35, %c0_36] : memref<72x1536xf32, #tpu.memory_space<vmem>>, vector<8x1536xf32>
    tpu.vector_store %arg10[%c0_35, %c0_36], %48 {strides = array<i32>} : memref<72x1536xf32, #tpu.memory_space<vmem>>, vector<8x1536xf32>,
    %c1535_i32_37 = arith.constant 1535 : i32
    %54 = tpu.dynamic_rotate %48 by %c1535_i32_37 dim 1 : vector<8x1536xf32>, i32 -> vector<8x1536xf32>
    %c8_38 = arith.constant 8 : index
    %c0_39 = arith.constant 0 : index
    %55 = vector.load %arg10[%c8_38, %c0_39] : memref<72x1536xf32, #tpu.memory_space<vmem>>, vector<8x1536xf32>
    tpu.vector_store %arg10[%c8_38, %c0_39], %54 {strides = array<i32>} : memref<72x1536xf32, #tpu.memory_space<vmem>>, vector<8x1536xf32>,
    %c1534_i32_40 = arith.constant 1534 : i32
    %56 = tpu.dynamic_rotate %48 by %c1534_i32_40 dim 1 : vector<8x1536xf32>, i32 -> vector<8x1536xf32>
    %c16_41 = arith.constant 16 : index
    %c0_42 = arith.constant 0 : index
    %57 = vector.load %arg10[%c16_41, %c0_42] : memref<72x1536xf32, #tpu.memory_space<vmem>>, vector<8x1536xf32>
    tpu.vector_store %arg10[%c16_41, %c0_42], %56 {strides = array<i32>} : memref<72x1536xf32, #tpu.memory_space<vmem>>, vector<8x1536xf32>,
    %c1520_i32_43 = arith.constant 1520 : i32
    %58 = tpu.dynamic_rotate %48 by %c1520_i32_43 dim 1 : vector<8x1536xf32>, i32 -> vector<8x1536xf32>
    %c24_44 = arith.constant 24 : index
    %c0_45 = arith.constant 0 : index
    %59 = vector.load %arg10[%c24_44, %c0_45] : memref<72x1536xf32, #tpu.memory_space<vmem>>, vector<8x1536xf32>
    tpu.vector_store %arg10[%c24_44, %c0_45], %58 {strides = array<i32>} : memref<72x1536xf32, #tpu.memory_space<vmem>>, vector<8x1536xf32>,
    %c1519_i32_46 = arith.constant 1519 : i32
    %60 = tpu.dynamic_rotate %48 by %c1519_i32_46 dim 1 : vector<8x1536xf32>, i32 -> vector<8x1536xf32>
    %c32_47 = arith.constant 32 : index
    %c0_48 = arith.constant 0 : index
    %61 = vector.load %arg10[%c32_47, %c0_48] : memref<72x1536xf32, #tpu.memory_space<vmem>>, vector<8x1536xf32>
    tpu.vector_store %arg10[%c32_47, %c0_48], %60 {strides = array<i32>} : memref<72x1536xf32, #tpu.memory_space<vmem>>, vector<8x1536xf32>,
    %c1518_i32_49 = arith.constant 1518 : i32
    %62 = tpu.dynamic_rotate %48 by %c1518_i32_49 dim 1 : vector<8x1536xf32>, i32 -> vector<8x1536xf32>
    %c40_50 = arith.constant 40 : index
    %c0_51 = arith.constant 0 : index
    %63 = vector.load %arg10[%c40_50, %c0_51] : memref<72x1536xf32, #tpu.memory_space<vmem>>, vector<8x1536xf32>
    tpu.vector_store %arg10[%c40_50, %c0_51], %62 {strides = array<i32>} : memref<72x1536xf32, #tpu.memory_space<vmem>>, vector<8x1536xf32>,
    %c1504_i32_52 = arith.constant 1504 : i32
    %64 = tpu.dynamic_rotate %48 by %c1504_i32_52 dim 1 : vector<8x1536xf32>, i32 -> vector<8x1536xf32>
    %c48_53 = arith.constant 48 : index
    %c0_54 = arith.constant 0 : index
    %65 = vector.load %arg10[%c48_53, %c0_54] : memref<72x1536xf32, #tpu.memory_space<vmem>>, vector<8x1536xf32>
    tpu.vector_store %arg10[%c48_53, %c0_54], %64 {strides = array<i32>} : memref<72x1536xf32, #tpu.memory_space<vmem>>, vector<8x1536xf32>,
    %c1503_i32_55 = arith.constant 1503 : i32
    %66 = tpu.dynamic_rotate %48 by %c1503_i32_55 dim 1 : vector<8x1536xf32>, i32 -> vector<8x1536xf32>
    %c56_56 = arith.constant 56 : index
    %c0_57 = arith.constant 0 : index
    %67 = vector.load %arg10[%c56_56, %c0_57] : memref<72x1536xf32, #tpu.memory_space<vmem>>, vector<8x1536xf32>
    tpu.vector_store %arg10[%c56_56, %c0_57], %66 {strides = array<i32>} : memref<72x1536xf32, #tpu.memory_space<vmem>>, vector<8x1536xf32>,
    %c1502_i32_58 = arith.constant 1502 : i32
    %68 = tpu.dynamic_rotate %48 by %c1502_i32_58 dim 1 : vector<8x1536xf32>, i32 -> vector<8x1536xf32>
    %c64_59 = arith.constant 64 : index
    %c0_60 = arith.constant 0 : index
    %69 = vector.load %arg10[%c64_59, %c0_60] : memref<72x1536xf32, #tpu.memory_space<vmem>>, vector<8x1536xf32>
    tpu.vector_store %arg10[%c64_59, %c0_60], %68 {strides = array<i32>} : memref<72x1536xf32, #tpu.memory_space<vmem>>, vector<8x1536xf32>,
    %c0_61 = arith.constant 0 : index
    %c0_62 = arith.constant 0 : index
    %70 = vector.load %arg10[%c0_61, %c0_62] : memref<72x1536xf32, #tpu.memory_space<vmem>>, vector<72x1536xf32>
    %cst_63 = arith.constant dense<0.000000e+00> : vector<8x1536xf32>
    %71 = tpu.matmul %49, %70, %cst_63 {dimension_numbers = #tpu.dot_dimension_numbers<[1], [0], [0], [1], [0, 0, 1, 1], [], []>} : vector<8x72xf32>, vector<72x1536xf32>, vector<8x1536xf32> -> vector<8x1536xf32>
    %72 = vector.broadcast %52 : vector<1x1536xf32> to vector<8x1536xf32>
    %73 = arith.mulf %71, %72 : vector<8x1536xf32>
    %cst_64 = arith.constant dense<0.000000e+00> : vector<8xf32>
    %74 = vector.multi_reduction <add>, %73, %cst_64 [1] : vector<8x1536xf32> to vector<8xf32>
    %75 = vector.shape_cast %74 : vector<8xf32> to vector<8x1xf32>
    %cst_65 = arith.constant 0.00115740742 : f32
    %76 = vector.broadcast %cst_65 : f32 to vector<8x1xf32>
    %77 = arith.mulf %75, %76 : vector<8x1xf32>
    %78 = arith.mulf %73, %71 : vector<8x1536xf32>
    %cst_66 = arith.constant dense<0.000000e+00> : vector<8xf32>
    %79 = vector.multi_reduction <add>, %78, %cst_66 [1] : vector<8x1536xf32> to vector<8xf32>
    %80 = vector.shape_cast %79 : vector<8xf32> to vector<8x1xf32>
    %cst_67 = arith.constant 0.00115740742 : f32
    %81 = vector.broadcast %cst_67 : f32 to vector<8x1xf32>
    %82 = arith.mulf %80, %81 : vector<8x1xf32>
    %83 = arith.mulf %77, %77 : vector<8x1xf32>
    %84 = arith.subf %82, %83 : vector<8x1xf32>
    %cst_68 = arith.constant 9.99999974E-6 : f32
    %85 = vector.broadcast %cst_68 : f32 to vector<8x1xf32>
    %86 = arith.addf %84, %85 : vector<8x1xf32>
    %87 = math.rsqrt %86 : vector<8x1xf32>
    %88 = arith.mulf %50, %87 : vector<8x1xf32>
    %89 = arith.mulf %77, %88 : vector<8x1xf32>
    %90 = arith.subf %51, %89 : vector<8x1xf32>
    %91 = vector.broadcast %88 : vector<8x1xf32> to vector<8x1536xf32>
    %92 = arith.mulf %71, %91 : vector<8x1536xf32>
    %93 = vector.broadcast %90 : vector<8x1xf32> to vector<8x1536xf32>
    %94 = arith.addf %92, %93 : vector<8x1536xf32>
    %cst_69 = arith.constant 0.000000e+00 : f32
    %95 = vector.broadcast %cst_69 : f32 to vector<8x1536xf32>
    %96 = arith.maximumf %94, %95 : vector<8x1536xf32>
    %c0_70 = arith.constant 0 : index
    %c0_71 = arith.constant 0 : index
    %97 = vector.load %arg9[%c0_70, %c0_71] : memref<8x1536xf32, #tpu.memory_space<vmem>>, vector<8x1536xf32>
    tpu.vector_store %arg9[%c0_70, %c0_71], %96 {strides = array<i32>} : memref<8x1536xf32, #tpu.memory_space<vmem>>, vector<8x1536xf32>,
    return
  }
}

</mosaic_0001>

<llo_original>
// kernel: block_forward.1
$region0: #{block_forward.1}
  #allocation0 [shape = 'u32[]', space=smem, size = 0x4, offset = 0x4, fixed_abs, tag = 'smem constant byte address 0x4 - core index']
  #allocation1 [shape = 'u32[144,128]{1,0:T(1,128)}', space=vmem, size = 0x12000, scoped, tag = 'internal scratch']
  #allocation2 [shape = 'f32[72,1536]{1,0:T(8,128)}', space=vmem, size = 0x6c000, scoped, tag = 'scratch operand']
  %s0 = inlined_call_operand.vmem [shape: f32[8,1536], index: 0, kind: input, shape index: {}]
  %s1 = inlined_call_operand.vmem [shape: f32[8,72], index: 1, kind: input, shape index: {}]
  %s2 = inlined_call_operand.vmem [shape: f32[8,1], index: 2, kind: input, shape index: {}]
  %s3 = inlined_call_operand.vmem [shape: f32[8,1], index: 3, kind: input, shape index: {}]
  %s4 = inlined_call_operand.vmem [shape: f32[8,72], index: 4, kind: input, shape index: {}]
  %s5 = inlined_call_operand.vmem [shape: f32[8,1], index: 5, kind: input, shape index: {}]
  %s6 = inlined_call_operand.vmem [shape: f32[8,1], index: 6, kind: input, shape index: {}]
  %s7 = inlined_call_operand.vmem [shape: f32[1,1536], index: 7, kind: input, shape index: {}]
  %s8 = inlined_call_operand.vmem [shape: f32[1,1536], index: 8, kind: input, shape index: {}]
  %s9 = inlined_call_operand.vmem [shape: f32[8,1536], index: 9, kind: output, shape index: {}]
  %s10 = sld [smem:[#allocation0]]
  $region46: #{block_forward.1} parent=0
    _
  %s12 = ssub.s32 1, %s10
  %s13 = scalar_select 0, %s12, %s10
  // Predicated region
  $region2: #{block_forward.1} parent=0 // pred_check
    _
  $region3: #{block_forward.1} parent=0 // pred_check_branch
    %15 = sbr.rel (0) target = $region5
  $region4: #{block_forward.1} parent=0 // pred_region
    _
  $region5: #{block_forward.1} parent=0 // pred_fallthru
    _
  // Predicated region
  $region6: #{block_forward.1} parent=0 // pred_check
    _
  $region7: #{block_forward.1} parent=0 // pred_check_branch
    %17 = sbr.rel (0) target = $region9
  $region8: #{block_forward.1} parent=0 // pred_region
    _
  $region9: #{block_forward.1} parent=0 // pred_fallthru
    _
  // Predicated region
  $region10: #{block_forward.1} parent=0 // pred_check
    _
  $region11: #{block_forward.1} parent=0 // pred_check_branch
    %19 = sbr.rel (0) target = $region13
  $region12: #{block_forward.1} parent=0 // pred_region
    _
  $region13: #{block_forward.1} parent=0 // pred_fallthru
    _
  // Predicated region
  $region14: #{block_forward.1} parent=0 // pred_check
    _
  $region15: #{block_forward.1} parent=0 // pred_check_branch
    %21 = sbr.rel (0) target = $region17
  $region16: #{block_forward.1} parent=0 // pred_region
    _
  $region17: #{block_forward.1} parent=0 // pred_fallthru
    _
  // Predicated region
  $region18: #{block_forward.1} parent=0 // pred_check
    _
  $region19: #{block_forward.1} parent=0 // pred_check_branch
    %23 = sbr.rel (0) target = $region21
  $region20: #{block_forward.1} parent=0 // pred_region
    _
  $region21: #{block_forward.1} parent=0 // pred_fallthru
    _
  // Predicated region
  $region22: #{block_forward.1} parent=0 // pred_check
    _
  $region23: #{block_forward.1} parent=0 // pred_check_branch
    %25 = sbr.rel (0) target = $region25
  $region24: #{block_forward.1} parent=0 // pred_region
    _
  $region25: #{block_forward.1} parent=0 // pred_fallthru
    _
  // Predicated region
  $region26: #{block_forward.1} parent=0 // pred_check
    _
  $region27: #{block_forward.1} parent=0 // pred_check_branch
    %27 = sbr.rel (0) target = $region29
  $region28: #{block_forward.1} parent=0 // pred_region
    _
  $region29: #{block_forward.1} parent=0 // pred_fallthru
    _
  // Predicated region
  $region30: #{block_forward.1} parent=0 // pred_check
    _
  $region31: #{block_forward.1} parent=0 // pred_check_branch
    %29 = sbr.rel (0) target = $region33
  $region32: #{block_forward.1} parent=0 // pred_region
    _
  $region33: #{block_forward.1} parent=0 // pred_fallthru
    _
  // Predicated region
  $region34: #{block_forward.1} parent=0 // pred_check
    _
  $region35: #{block_forward.1} parent=0 // pred_check_branch
    %31 = sbr.rel (0) target = $region37
  $region36: #{block_forward.1} parent=0 // pred_region
    _
  $region37: #{block_forward.1} parent=0 // pred_fallthru
    _
  %v32 = vld [vmem:[%s0] sm:$0xff]
  %v33 = vld [vmem:[%s0 + $0x8] sm:$0xff]
  %v34 = vld [vmem:[%s0 + $0x10] sm:$0xff]
  %v35 = vld [vmem:[%s0 + $0x18] sm:$0xff]
  %v36 = vld [vmem:[%s0 + $0x20] sm:$0xff]
  %v37 = vld [vmem:[%s0 + $0x28] sm:$0xff]
  %v38 = vld [vmem:[%s0 + $0x30] sm:$0xff]
  %v39 = vld [vmem:[%s0 + $0x38] sm:$0xff]
  %v40 = vld [vmem:[%s0 + $0x40] sm:$0xff]
  %v41 = vld [vmem:[%s0 + $0x48] sm:$0xff]
  %v42 = vld [vmem:[%s0 + $0x50] sm:$0xff]
  %v43 = vld [vmem:[%s0 + $0x58] sm:$0xff]
  %v44 = vld [vmem:[%s1] sm:$0xff]
  %v45 = vld [vmem:[%s2] sm:$0xff]
  %v46 = vld [vmem:[%s3] sm:$0xff]
  %v47 = vld [vmem:[%s7] sm:$0xff]
  %v48 = vld [vmem:[%s7 + $0x8] sm:$0xf]
  %49 = vst [vmem:[#allocation2] sm:$0xff] %v32
  %50 = vst [vmem:[#allocation2 + $0x8] sm:$0xff] %v33
  %51 = vst [vmem:[#allocation2 + $0x10] sm:$0xff] %v34
  %52 = vst [vmem:[#allocation2 + $0x18] sm:$0xff] %v35
  %53 = vst [vmem:[#allocation2 + $0x20] sm:$0xff] %v36
  %54 = vst [vmem:[#allocation2 + $0x28] sm:$0xff] %v37
  %55 = vst [vmem:[#allocation2 + $0x30] sm:$0xff] %v38
  %56 = vst [vmem:[#allocation2 + $0x38] sm:$0xff] %v39
  %57 = vst [vmem:[#allocation2 + $0x40] sm:$0xff] %v40
  %58 = vst [vmem:[#allocation2 + $0x48] sm:$0xff] %v41
  %59 = vst [vmem:[#allocation2 + $0x50] sm:$0xff] %v42
  %60 = vst [vmem:[#allocation2 + $0x58] sm:$0xff] %v43
  %61 = vrot.lane.b32.xlu0 %v32, 127
  %v62 = vpop.permute.xlu0 %61
  %63 = vrot.lane.b32.xlu0 %v33, 127
  %v64 = vpop.permute.xlu0 %63
  %65 = vrot.lane.b32.xlu0 %v34, 127
  %v66 = vpop.permute.xlu0 %65
  %67 = vrot.lane.b32.xlu0 %v35, 127
  %v68 = vpop.permute.xlu0 %67
  %69 = vrot.lane.b32.xlu0 %v36, 127
  %v70 = vpop.permute.xlu0 %69
  %71 = vrot.lane.b32.xlu0 %v37, 127
  %v72 = vpop.permute.xlu0 %71
  %73 = vrot.lane.b32.xlu0 %v38, 127
  %v74 = vpop.permute.xlu0 %73
  %75 = vrot.lane.b32.xlu0 %v39, 127
  %v76 = vpop.permute.xlu0 %75
  %77 = vrot.lane.b32.xlu0 %v40, 127
  %v78 = vpop.permute.xlu0 %77
  %79 = vrot.lane.b32.xlu0 %v41, 127
  %v80 = vpop.permute.xlu0 %79
  %81 = vrot.lane.b32.xlu0 %v42, 127
  %v82 = vpop.permute.xlu0 %81
  %83 = vrot.lane.b32.xlu0 %v43, 127
  %v84 = vpop.permute.xlu0 %83
  %v85 = vlaneseq
  %v86 = vand.u32 %v85, 127
  %vm87 = vcmp.lt.s32.totalorder %v86, 127
  %v88 = vsel %vm87, %v82, %v84
  %v89 = vsel %vm87, %v80, %v82
  %v90 = vsel %vm87, %v78, %v80
  %v91 = vsel %vm87, %v76, %v78
  %v92 = vsel %vm87, %v74, %v76
  %v93 = vsel %vm87, %v72, %v74
  %v94 = vsel %vm87, %v70, %v72
  %v95 = vsel %vm87, %v68, %v70
  %v96 = vsel %vm87, %v66, %v68
  %v97 = vsel %vm87, %v64, %v66
  %v98 = vsel %vm87, %v62, %v64
  %v99 = vsel %vm87, %v84, %v62
  %100 = vst [vmem:[#allocation2 + $0x60] sm:$0xff] %v98
  %101 = vst [vmem:[#allocation2 + $0x68] sm:$0xff] %v97
  %102 = vst [vmem:[#allocation2 + $0x70] sm:$0xff] %v96
  %103 = vst [vmem:[#allocation2 + $0x78] sm:$0xff] %v95
  %104 = vst [vmem:[#allocation2 + $0x80] sm:$0xff] %v94
  %105 = vst [vmem:[#allocation2 + $0x88] sm:$0xff] %v93
  %106 = vst [vmem:[#allocation2 + $0x90] sm:$0xff] %v92
  %107 = vst [vmem:[#allocation2 + $0x98] sm:$0xff] %v91
  %108 = vst [vmem:[#allocation2 + $0xa0] sm:$0xff] %v90
  %109 = vst [vmem:[#allocation2 + $0xa8] sm:$0xff] %v89
  %110 = vst [vmem:[#allocation2 + $0xb0] sm:$0xff] %v88
  %111 = vst [vmem:[#allocation2 + $0xb8] sm:$0xff] %v99
  %112 = vrot.lane.b32.xlu0 %v32, 126
  %v113 = vpop.permute.xlu0 %112
  %114 = vrot.lane.b32.xlu0 %v33, 126
  %v115 = vpop.permute.xlu0 %114
  %116 = vrot.lane.b32.xlu0 %v34, 126
  %v117 = vpop.permute.xlu0 %116
  %118 = vrot.lane.b32.xlu0 %v35, 126
  %v119 = vpop.permute.xlu0 %118
  %120 = vrot.lane.b32.xlu0 %v36, 126
  %v121 = vpop.permute.xlu0 %120
  %122 = vrot.lane.b32.xlu0 %v37, 126
  %v123 = vpop.permute.xlu0 %122
  %124 = vrot.lane.b32.xlu0 %v38, 126
  %v125 = vpop.permute.xlu0 %124
  %126 = vrot.lane.b32.xlu0 %v39, 126
  %v127 = vpop.permute.xlu0 %126
  %128 = vrot.lane.b32.xlu0 %v40, 126
  %v129 = vpop.permute.xlu0 %128
  %130 = vrot.lane.b32.xlu0 %v41, 126
  %v131 = vpop.permute.xlu0 %130
  %132 = vrot.lane.b32.xlu0 %v42, 126
  %v133 = vpop.permute.xlu0 %132
  %134 = vrot.lane.b32.xlu0 %v43, 126
  %v135 = vpop.permute.xlu0 %134
  %vm136 = vcmp.lt.s32.totalorder %v86, 126
  %v137 = vsel %vm136, %v133, %v135
  %v138 = vsel %vm136, %v131, %v133
  %v139 = vsel %vm136, %v129, %v131
  %v140 = vsel %vm136, %v127, %v129
  %v141 = vsel %vm136, %v125, %v127
  %v142 = vsel %vm136, %v123, %v125
  %v143 = vsel %vm136, %v121, %v123
  %v144 = vsel %vm136, %v119, %v121
  %v145 = vsel %vm136, %v117, %v119
  %v146 = vsel %vm136, %v115, %v117
  %v147 = vsel %vm136, %v113, %v115
  %v148 = vsel %vm136, %v135, %v113
  %149 = vst [vmem:[#allocation2 + $0xc0] sm:$0xff] %v147
  %150 = vst [vmem:[#allocation2 + $0xc8] sm:$0xff] %v146
  %151 = vst [vmem:[#allocation2 + $0xd0] sm:$0xff] %v145
  %152 = vst [vmem:[#allocation2 + $0xd8] sm:$0xff] %v144
  %153 = vst [vmem:[#allocation2 + $0xe0] sm:$0xff] %v143
  %154 = vst [vmem:[#allocation2 + $0xe8] sm:$0xff] %v142
  %155 = vst [vmem:[#allocation2 + $0xf0] sm:$0xff] %v141
  %156 = vst [vmem:[#allocation2 + $0xf8] sm:$0xff] %v140
  %157 = vst [vmem:[#allocation2 + $0x100] sm:$0xff] %v139
  %158 = vst [vmem:[#allocation2 + $0x108] sm:$0xff] %v138
  %159 = vst [vmem:[#allocation2 + $0x110] sm:$0xff] %v137
  %160 = vst [vmem:[#allocation2 + $0x118] sm:$0xff] %v148
  %161 = vrot.lane.b32.xlu0 %v32, 112
  %v162 = vpop.permute.xlu0 %161
  %163 = vrot.lane.b32.xlu0 %v33, 112
  %v164 = vpop.permute.xlu0 %163
  %165 = vrot.lane.b32.xlu0 %v34, 112
  %v166 = vpop.permute.xlu0 %165
  %167 = vrot.lane.b32.xlu0 %v35, 112
  %v168 = vpop.permute.xlu0 %167
  %169 = vrot.lane.b32.xlu0 %v36, 112
  %v170 = vpop.permute.xlu0 %169
  %171 = vrot.lane.b32.xlu0 %v37, 112
  %v172 = vpop.permute.xlu0 %171
  %173 = vrot.lane.b32.xlu0 %v38, 112
  %v174 = vpop.permute.xlu0 %173
  %175 = vrot.lane.b32.xlu0 %v39, 112
  %v176 = vpop.permute.xlu0 %175
  %177 = vrot.lane.b32.xlu0 %v40, 112
  %v178 = vpop.permute.xlu0 %177
  %179 = vrot.lane.b32.xlu0 %v41, 112
  %v180 = vpop.permute.xlu0 %179
  %181 = vrot.lane.b32.xlu0 %v42, 112
  %v182 = vpop.permute.xlu0 %181
  %183 = vrot.lane.b32.xlu0 %v43, 112
  %v184 = vpop.permute.xlu0 %183
  %vm185 = vcmp.lt.s32.totalorder %v86, 112
  %v186 = vsel %vm185, %v182, %v184
  %v187 = vsel %vm185, %v180, %v182
  %v188 = vsel %vm185, %v178, %v180
  %v189 = vsel %vm185, %v176, %v178
  %v190 = vsel %vm185, %v174, %v176
  %v191 = vsel %vm185, %v172, %v174
  %v192 = vsel %vm185, %v170, %v172
  %v193 = vsel %vm185, %v168, %v170
  %v194 = vsel %vm185, %v166, %v168
  %v195 = vsel %vm185, %v164, %v166
  %v196 = vsel %vm185, %v162, %v164
  %v197 = vsel %vm185, %v184, %v162
  %198 = vst [vmem:[#allocation2 + $0x120] sm:$0xff] %v196
  %199 = vst [vmem:[#allocation2 + $0x128] sm:$0xff] %v195
  %200 = vst [vmem:[#allocation2 + $0x130] sm:$0xff] %v194
  %201 = vst [vmem:[#allocation2 + $0x138] sm:$0xff] %v193
  %202 = vst [vmem:[#allocation2 + $0x140] sm:$0xff] %v192
  %203 = vst [vmem:[#allocation2 + $0x148] sm:$0xff] %v191
  %204 = vst [vmem:[#allocation2 + $0x150] sm:$0xff] %v190
  %205 = vst [vmem:[#allocation2 + $0x158] sm:$0xff] %v189
  %206 = vst [vmem:[#allocation2 + $0x160] sm:$0xff] %v188
  %207 = vst [vmem:[#allocation2 + $0x168] sm:$0xff] %v187
  %208 = vst [vmem:[#allocation2 + $0x170] sm:$0xff] %v186
  %209 = vst [vmem:[#allocation2 + $0x178] sm:$0xff] %v197
  %210 = vrot.lane.b32.xlu0 %v32, 111
  %v211 = vpop.permute.xlu0 %210
  %212 = vrot.lane.b32.xlu0 %v33, 111
  %v213 = vpop.permute.xlu0 %212
  %214 = vrot.lane.b32.xlu0 %v34, 111
  %v215 = vpop.permute.xlu0 %214
  %216 = vrot.lane.b32.xlu0 %v35, 111
  %v217 = vpop.permute.xlu0 %216
  %218 = vrot.lane.b32.xlu0 %v36, 111
  %v219 = vpop.permute.xlu0 %218
  %220 = vrot.lane.b32.xlu0 %v37, 111
  %v221 = vpop.permute.xlu0 %220
  %222 = vrot.lane.b32.xlu0 %v38, 111
  %v223 = vpop.permute.xlu0 %222
  %224 = vrot.lane.b32.xlu0 %v39, 111
  %v225 = vpop.permute.xlu0 %224
  %226 = vrot.lane.b32.xlu0 %v40, 111
  %v227 = vpop.permute.xlu0 %226
  %228 = vrot.lane.b32.xlu0 %v41, 111
  %v229 = vpop.permute.xlu0 %228
  %230 = vrot.lane.b32.xlu0 %v42, 111
  %v231 = vpop.permute.xlu0 %230
  %232 = vrot.lane.b32.xlu0 %v43, 111
  %v233 = vpop.permute.xlu0 %232
  %vm234 = vcmp.lt.s32.totalorder %v86, 111
  %v235 = vsel %vm234, %v231, %v233
  %v236 = vsel %vm234, %v229, %v231
  %v237 = vsel %vm234, %v227, %v229
  %v238 = vsel %vm234, %v225, %v227
  %v239 = vsel %vm234, %v223, %v225
  %v240 = vsel %vm234, %v221, %v223
  %v241 = vsel %vm234, %v219, %v221
  %v242 = vsel %vm234, %v217, %v219
  %v243 = vsel %vm234, %v215, %v217
  %v244 = vsel %vm234, %v213, %v215
  %v245 = vsel %vm234, %v211, %v213
  %v246 = vsel %vm234, %v233, %v211
  %247 = vst [vmem:[#allocation2 + $0x180] sm:$0xff] %v245
  %248 = vst [vmem:[#allocation2 + $0x188] sm:$0xff] %v244
  %249 = vst [vmem:[#allocation2 + $0x190] sm:$0xff] %v243
  %250 = vst [vmem:[#allocation2 + $0x198] sm:$0xff] %v242
  %251 = vst [vmem:[#allocation2 + $0x1a0] sm:$0xff] %v241
  %252 = vst [vmem:[#allocation2 + $0x1a8] sm:$0xff] %v240
  %253 = vst [vmem:[#allocation2 + $0x1b0] sm:$0xff] %v239
  %254 = vst [vmem:[#allocation2 + $0x1b8] sm:$0xff] %v238
  %255 = vst [vmem:[#allocation2 + $0x1c0] sm:$0xff] %v237
  %256 = vst [vmem:[#allocation2 + $0x1c8] sm:$0xff] %v236
  %257 = vst [vmem:[#allocation2 + $0x1d0] sm:$0xff] %v235
  %258 = vst [vmem:[#allocation2 + $0x1d8] sm:$0xff] %v246
  %259 = vrot.lane.b32.xlu0 %v32, 110
  %v260 = vpop.permute.xlu0 %259
  %261 = vrot.lane.b32.xlu0 %v33, 110
  %v262 = vpop.permute.xlu0 %261
  %263 = vrot.lane.b32.xlu0 %v34, 110
  %v264 = vpop.permute.xlu0 %263
  %265 = vrot.lane.b32.xlu0 %v35, 110
  %v266 = vpop.permute.xlu0 %265
  %267 = vrot.lane.b32.xlu0 %v36, 110
  %v268 = vpop.permute.xlu0 %267
  %269 = vrot.lane.b32.xlu0 %v37, 110
  %v270 = vpop.permute.xlu0 %269
  %271 = vrot.lane.b32.xlu0 %v38, 110
  %v272 = vpop.permute.xlu0 %271
  %273 = vrot.lane.b32.xlu0 %v39, 110
  %v274 = vpop.permute.xlu0 %273
  %275 = vrot.lane.b32.xlu0 %v40, 110
  %v276 = vpop.permute.xlu0 %275
  %277 = vrot.lane.b32.xlu0 %v41, 110
  %v278 = vpop.permute.xlu0 %277
  %279 = vrot.lane.b32.xlu0 %v42, 110
  %v280 = vpop.permute.xlu0 %279
  %281 = vrot.lane.b32.xlu0 %v43, 110
  %v282 = vpop.permute.xlu0 %281
  %vm283 = vcmp.lt.s32.totalorder %v86, 110
  %v284 = vsel %vm283, %v280, %v282
  %v285 = vsel %vm283, %v278, %v280
  %v286 = vsel %vm283, %v276, %v278
  %v287 = vsel %vm283, %v274, %v276
  %v288 = vsel %vm283, %v272, %v274
  %v289 = vsel %vm283, %v270, %v272
  %v290 = vsel %vm283, %v268, %v270
  %v291 = vsel %vm283, %v266, %v268
  %v292 = vsel %vm283, %v264, %v266
  %v293 = vsel %vm283, %v262, %v264
  %v294 = vsel %vm283, %v260, %v262
  %v295 = vsel %vm283, %v282, %v260
  %296 = vst [vmem:[#allocation2 + $0x1e0] sm:$0xff] %v294
  %297 = vst [vmem:[#allocation2 + $0x1e8] sm:$0xff] %v293
  %298 = vst [vmem:[#allocation2 + $0x1f0] sm:$0xff] %v292
  %299 = vst [vmem:[#allocation2 + $0x1f8] sm:$0xff] %v291
  %300 = vst [vmem:[#allocation2 + $0x200] sm:$0xff] %v290
  %301 = vst [vmem:[#allocation2 + $0x208] sm:$0xff] %v289
  %302 = vst [vmem:[#allocation2 + $0x210] sm:$0xff] %v288
  %303 = vst [vmem:[#allocation2 + $0x218] sm:$0xff] %v287
  %304 = vst [vmem:[#allocation2 + $0x220] sm:$0xff] %v286
  %305 = vst [vmem:[#allocation2 + $0x228] sm:$0xff] %v285
  %306 = vst [vmem:[#allocation2 + $0x230] sm:$0xff] %v284
  %307 = vst [vmem:[#allocation2 + $0x238] sm:$0xff] %v295
  %308 = vrot.lane.b32.xlu0 %v32, 96
  %v309 = vpop.permute.xlu0 %308
  %310 = vrot.lane.b32.xlu0 %v33, 96
  %v311 = vpop.permute.xlu0 %310
  %312 = vrot.lane.b32.xlu0 %v34, 96
  %v313 = vpop.permute.xlu0 %312
  %314 = vrot.lane.b32.xlu0 %v35, 96
  %v315 = vpop.permute.xlu0 %314
  %316 = vrot.lane.b32.xlu0 %v36, 96
  %v317 = vpop.permute.xlu0 %316
  %318 = vrot.lane.b32.xlu0 %v37, 96
  %v319 = vpop.permute.xlu0 %318
  %320 = vrot.lane.b32.xlu0 %v38, 96
  %v321 = vpop.permute.xlu0 %320
  %322 = vrot.lane.b32.xlu0 %v39, 96
  %v323 = vpop.permute.xlu0 %322
  %324 = vrot.lane.b32.xlu0 %v40, 96
  %v325 = vpop.permute.xlu0 %324
  %326 = vrot.lane.b32.xlu0 %v41, 96
  %v327 = vpop.permute.xlu0 %326
  %328 = vrot.lane.b32.xlu0 %v42, 96
  %v329 = vpop.permute.xlu0 %328
  %330 = vrot.lane.b32.xlu0 %v43, 96
  %v331 = vpop.permute.xlu0 %330
  %vm332 = vcmp.lt.s32.totalorder %v86, 96
  %v333 = vsel %vm332, %v329, %v331
  %v334 = vsel %vm332, %v327, %v329
  %v335 = vsel %vm332, %v325, %v327
  %v336 = vsel %vm332, %v323, %v325
  %v337 = vsel %vm332, %v321, %v323
  %v338 = vsel %vm332, %v319, %v321
  %v339 = vsel %vm332, %v317, %v319
  %v340 = vsel %vm332, %v315, %v317
  %v341 = vsel %vm332, %v313, %v315
  %v342 = vsel %vm332, %v311, %v313
  %v343 = vsel %vm332, %v309, %v311
  %v344 = vsel %vm332, %v331, %v309
  %345 = vst [vmem:[#allocation2 + $0x240] sm:$0xff] %v343
  %346 = vst [vmem:[#allocation2 + $0x248] sm:$0xff] %v342
  %347 = vst [vmem:[#allocation2 + $0x250] sm:$0xff] %v341
  %348 = vst [vmem:[#allocation2 + $0x258] sm:$0xff] %v340
  %349 = vst [vmem:[#allocation2 + $0x260] sm:$0xff] %v339
  %350 = vst [vmem:[#allocation2 + $0x268] sm:$0xff] %v338
  %351 = vst [vmem:[#allocation2 + $0x270] sm:$0xff] %v337
  %352 = vst [vmem:[#allocation2 + $0x278] sm:$0xff] %v336
  %353 = vst [vmem:[#allocation2 + $0x280] sm:$0xff] %v335
  %354 = vst [vmem:[#allocation2 + $0x288] sm:$0xff] %v334
  %355 = vst [vmem:[#allocation2 + $0x290] sm:$0xff] %v333
  %356 = vst [vmem:[#allocation2 + $0x298] sm:$0xff] %v344
  %357 = vrot.lane.b32.xlu0 %v32, 95
  %v358 = vpop.permute.xlu0 %357
  %359 = vrot.lane.b32.xlu0 %v33, 95
  %v360 = vpop.permute.xlu0 %359
  %361 = vrot.lane.b32.xlu0 %v34, 95
  %v362 = vpop.permute.xlu0 %361
  %363 = vrot.lane.b32.xlu0 %v35, 95
  %v364 = vpop.permute.xlu0 %363
  %365 = vrot.lane.b32.xlu0 %v36, 95
  %v366 = vpop.permute.xlu0 %365
  %367 = vrot.lane.b32.xlu0 %v37, 95
  %v368 = vpop.permute.xlu0 %367
  %369 = vrot.lane.b32.xlu0 %v38, 95
  %v370 = vpop.permute.xlu0 %369
  %371 = vrot.lane.b32.xlu0 %v39, 95
  %v372 = vpop.permute.xlu0 %371
  %373 = vrot.lane.b32.xlu0 %v40, 95
  %v374 = vpop.permute.xlu0 %373
  %375 = vrot.lane.b32.xlu0 %v41, 95
  %v376 = vpop.permute.xlu0 %375
  %377 = vrot.lane.b32.xlu0 %v42, 95
  %v378 = vpop.permute.xlu0 %377
  %379 = vrot.lane.b32.xlu0 %v43, 95
  %v380 = vpop.permute.xlu0 %379
  %vm381 = vcmp.lt.s32.totalorder %v86, 95
  %v382 = vsel %vm381, %v378, %v380
  %v383 = vsel %vm381, %v376, %v378
  %v384 = vsel %vm381, %v374, %v376
  %v385 = vsel %vm381, %v372, %v374
  %v386 = vsel %vm381, %v370, %v372
  %v387 = vsel %vm381, %v368, %v370
  %v388 = vsel %vm381, %v366, %v368
  %v389 = vsel %vm381, %v364, %v366
  %v390 = vsel %vm381, %v362, %v364
  %v391 = vsel %vm381, %v360, %v362
  %v392 = vsel %vm381, %v358, %v360
  %v393 = vsel %vm381, %v380, %v358
  %394 = vst [vmem:[#allocation2 + $0x2a0] sm:$0xff] %v392
  %395 = vst [vmem:[#allocation2 + $0x2a8] sm:$0xff] %v391
  %396 = vst [vmem:[#allocation2 + $0x2b0] sm:$0xff] %v390
  %397 = vst [vmem:[#allocation2 + $0x2b8] sm:$0xff] %v389
  %398 = vst [vmem:[#allocation2 + $0x2c0] sm:$0xff] %v388
  %399 = vst [vmem:[#allocation2 + $0x2c8] sm:$0xff] %v387
  %400 = vst [vmem:[#allocation2 + $0x2d0] sm:$0xff] %v386
  %401 = vst [vmem:[#allocation2 + $0x2d8] sm:$0xff] %v385
  %402 = vst [vmem:[#allocation2 + $0x2e0] sm:$0xff] %v384
  %403 = vst [vmem:[#allocation2 + $0x2e8] sm:$0xff] %v383
  %404 = vst [vmem:[#allocation2 + $0x2f0] sm:$0xff] %v382
  %405 = vst [vmem:[#allocation2 + $0x2f8] sm:$0xff] %v393
  %406 = vrot.lane.b32.xlu0 %v32, 94
  %v407 = vpop.permute.xlu0 %406
  %408 = vrot.lane.b32.xlu0 %v33, 94
  %v409 = vpop.permute.xlu0 %408
  %410 = vrot.lane.b32.xlu0 %v34, 94
  %v411 = vpop.permute.xlu0 %410
  %412 = vrot.lane.b32.xlu0 %v35, 94
  %v413 = vpop.permute.xlu0 %412
  %414 = vrot.lane.b32.xlu0 %v36, 94
  %v415 = vpop.permute.xlu0 %414
  %416 = vrot.lane.b32.xlu0 %v37, 94
  %v417 = vpop.permute.xlu0 %416
  %418 = vrot.lane.b32.xlu0 %v38, 94
  %v419 = vpop.permute.xlu0 %418
  %420 = vrot.lane.b32.xlu0 %v39, 94
  %v421 = vpop.permute.xlu0 %420
  %422 = vrot.lane.b32.xlu0 %v40, 94
  %v423 = vpop.permute.xlu0 %422
  %424 = vrot.lane.b32.xlu0 %v41, 94
  %v425 = vpop.permute.xlu0 %424
  %426 = vrot.lane.b32.xlu0 %v42, 94
  %v427 = vpop.permute.xlu0 %426
  %428 = vrot.lane.b32.xlu0 %v43, 94
  %v429 = vpop.permute.xlu0 %428
  %vm430 = vcmp.lt.s32.totalorder %v86, 94
  %v431 = vsel %vm430, %v427, %v429
  %v432 = vsel %vm430, %v425, %v427
  %v433 = vsel %vm430, %v423, %v425
  %v434 = vsel %vm430, %v421, %v423
  %v435 = vsel %vm430, %v419, %v421
  %v436 = vsel %vm430, %v417, %v419
  %v437 = vsel %vm430, %v415, %v417
  %v438 = vsel %vm430, %v413, %v415
  %v439 = vsel %vm430, %v411, %v413
  %v440 = vsel %vm430, %v409, %v411
  %v441 = vsel %vm430, %v407, %v409
  %v442 = vsel %vm430, %v429, %v407
  %443 = vst [vmem:[#allocation2 + $0x300] sm:$0xff] %v441
  %444 = vst [vmem:[#allocation2 + $0x308] sm:$0xff] %v440
  %445 = vst [vmem:[#allocation2 + $0x310] sm:$0xff] %v439
  %446 = vst [vmem:[#allocation2 + $0x318] sm:$0xff] %v438
  %447 = vst [vmem:[#allocation2 + $0x320] sm:$0xff] %v437
  %448 = vst [vmem:[#allocation2 + $0x328] sm:$0xff] %v436
  %449 = vst [vmem:[#allocation2 + $0x330] sm:$0xff] %v435
  %450 = vst [vmem:[#allocation2 + $0x338] sm:$0xff] %v434
  %451 = vst [vmem:[#allocation2 + $0x340] sm:$0xff] %v433
  %452 = vst [vmem:[#allocation2 + $0x348] sm:$0xff] %v432
  %453 = vst [vmem:[#allocation2 + $0x350] sm:$0xff] %v431
  %454 = vst [vmem:[#allocation2 + $0x358] sm:$0xff] %v442
  %v455 = vld [vmem:[#allocation2] sm:$0xff]
  %v456 = vld [vmem:[#allocation2 + $0x8] sm:$0xff]
  %v457 = vld [vmem:[#allocation2 + $0x10] sm:$0xff]
  %v458 = vld [vmem:[#allocation2 + $0x18] sm:$0xff]
  %v459 = vld [vmem:[#allocation2 + $0x20] sm:$0xff]
  %v460 = vld [vmem:[#allocation2 + $0x28] sm:$0xff]
  %v461 = vld [vmem:[#allocation2 + $0x30] sm:$0xff]
  %v462 = vld [vmem:[#allocation2 + $0x38] sm:$0xff]
  %v463 = vld [vmem:[#allocation2 + $0x40] sm:$0xff]
  %v464 = vld [vmem:[#allocation2 + $0x48] sm:$0xff]
  %v465 = vld [vmem:[#allocation2 + $0x50] sm:$0xff]
  %v466 = vld [vmem:[#allocation2 + $0x58] sm:$0xff]
  %v467 = vld [vmem:[#allocation2 + $0x60] sm:$0xff]
  %v468 = vld [vmem:[#allocation2 + $0x68] sm:$0xff]
  %v469 = vld [vmem:[#allocation2 + $0x70] sm:$0xff]
  %v470 = vld [vmem:[#allocation2 + $0x78] sm:$0xff]
  %v471 = vld [vmem:[#allocation2 + $0x80] sm:$0xff]
  %v472 = vld [vmem:[#allocation2 + $0x88] sm:$0xff]
  %v473 = vld [vmem:[#allocation2 + $0x90] sm:$0xff]
  %v474 = vld [vmem:[#allocation2 + $0x98] sm:$0xff]
  %v475 = vld [vmem:[#allocation2 + $0xa0] sm:$0xff]
  %v476 = vld [vmem:[#allocation2 + $0xa8] sm:$0xff]
  %v477 = vld [vmem:[#allocation2 + $0xb0] sm:$0xff]
  %v478 = vld [vmem:[#allocation2 + $0xb8] sm:$0xff]
  %v479 = vld [vmem:[#allocation2 + $0xc0] sm:$0xff]
  %v480 = vld [vmem:[#allocation2 + $0xc8] sm:$0xff]
  %v481 = vld [vmem:[#allocation2 + $0xd0] sm:$0xff]
  %v482 = vld [vmem:[#allocation2 + $0xd8] sm:$0xff]
  %v483 = vld [vmem:[#allocation2 + $0xe0] sm:$0xff]
  %v484 = vld [vmem:[#allocation2 + $0xe8] sm:$0xff]
  %v485 = vld [vmem:[#allocation2 + $0xf0] sm:$0xff]
  %v486 = vld [vmem:[#allocation2 + $0xf8] sm:$0xff]
  %v487 = vld [vmem:[#allocation2 + $0x100] sm:$0xff]
  %v488 = vld [vmem:[#allocation2 + $0x108] sm:$0xff]
  %v489 = vld [vmem:[#allocation2 + $0x110] sm:$0xff]
  %v490 = vld [vmem:[#allocation2 + $0x118] sm:$0xff]
  %v491 = vld [vmem:[#allocation2 + $0x120] sm:$0xff]
  %v492 = vld [vmem:[#allocation2 + $0x128] sm:$0xff]
  %v493 = vld [vmem:[#allocation2 + $0x130] sm:$0xff]
  %v494 = vld [vmem:[#allocation2 + $0x138] sm:$0xff]
  %v495 = vld [vmem:[#allocation2 + $0x140] sm:$0xff]
  %v496 = vld [vmem:[#allocation2 + $0x148] sm:$0xff]
  %v497 = vld [vmem:[#allocation2 + $0x150] sm:$0xff]
  %v498 = vld [vmem:[#allocation2 + $0x158] sm:$0xff]
  %v499 = vld [vmem:[#allocation2 + $0x160] sm:$0xff]
  %v500 = vld [vmem:[#allocation2 + $0x168] sm:$0xff]
  %v501 = vld [vmem:[#allocation2 + $0x170] sm:$0xff]
  %v502 = vld [vmem:[#allocation2 + $0x178] sm:$0xff]
  %v503 = vld [vmem:[#allocation2 + $0x180] sm:$0xff]
  %v504 = vld [vmem:[#allocation2 + $0x188] sm:$0xff]
  %v505 = vld [vmem:[#allocation2 + $0x190] sm:$0xff]
  %v506 = vld [vmem:[#allocation2 + $0x198] sm:$0xff]
  %v507 = vld [vmem:[#allocation2 + $0x1a0] sm:$0xff]
  %v508 = vld [vmem:[#allocation2 + $0x1a8] sm:$0xff]
  %v509 = vld [vmem:[#allocation2 + $0x1b0] sm:$0xff]
  %v510 = vld [vmem:[#allocation2 + $0x1b8] sm:$0xff]
  %v511 = vld [vmem:[#allocation2 + $0x1c0] sm:$0xff]
  %v512 = vld [vmem:[#allocation2 + $0x1c8] sm:$0xff]
  %v513 = vld [vmem:[#allocation2 + $0x1d0] sm:$0xff]
  %v514 = vld [vmem:[#allocation2 + $0x1d8] sm:$0xff]
  %v515 = vld [vmem:[#allocation2 + $0x1e0] sm:$0xff]
  %v516 = vld [vmem:[#allocation2 + $0x1e8] sm:$0xff]
  %v517 = vld [vmem:[#allocation2 + $0x1f0] sm:$0xff]
  %v518 = vld [vmem:[#allocation2 + $0x1f8] sm:$0xff]
  %v519 = vld [vmem:[#allocation2 + $0x200] sm:$0xff]
  %v520 = vld [vmem:[#allocation2 + $0x208] sm:$0xff]
  %v521 = vld [vmem:[#allocation2 + $0x210] sm:$0xff]
  %v522 = vld [vmem:[#allocation2 + $0x218] sm:$0xff]
  %v523 = vld [vmem:[#allocation2 + $0x220] sm:$0xff]
  %v524 = vld [vmem:[#allocation2 + $0x228] sm:$0xff]
  %v525 = vld [vmem:[#allocation2 + $0x230] sm:$0xff]
  %v526 = vld [vmem:[#allocation2 + $0x238] sm:$0xff]
  %v527 = vld [vmem:[#allocation2 + $0x240] sm:$0xff]
  %v528 = vld [vmem:[#allocation2 + $0x248] sm:$0xff]
  %v529 = vld [vmem:[#allocation2 + $0x250] sm:$0xff]
  %v530 = vld [vmem:[#allocation2 + $0x258] sm:$0xff]
  %v531 = vld [vmem:[#allocation2 + $0x260] sm:$0xff]
  %v532 = vld [vmem:[#allocation2 + $0x268] sm:$0xff]
  %v533 = vld [vmem:[#allocation2 + $0x270] sm:$0xff]
  %v534 = vld [vmem:[#allocation2 + $0x278] sm:$0xff]
  %v535 = vld [vmem:[#allocation2 + $0x280] sm:$0xff]
  %v536 = vld [vmem:[#allocation2 + $0x288] sm:$0xff]
  %v537 = vld [vmem:[#allocation2 + $0x290] sm:$0xff]
  %v538 = vld [vmem:[#allocation2 + $0x298] sm:$0xff]
  %v539 = vld [vmem:[#allocation2 + $0x2a0] sm:$0xff]
  %v540 = vld [vmem:[#allocation2 + $0x2a8] sm:$0xff]
  %v541 = vld [vmem:[#allocation2 + $0x2b0] sm:$0xff]
  %v542 = vld [vmem:[#allocation2 + $0x2b8] sm:$0xff]
  %v543 = vld [vmem:[#allocation2 + $0x2c0] sm:$0xff]
  %v544 = vld [vmem:[#allocation2 + $0x2c8] sm:$0xff]
  %v545 = vld [vmem:[#allocation2 + $0x2d0] sm:$0xff]
  %v546 = vld [vmem:[#allocation2 + $0x2d8] sm:$0xff]
  %v547 = vld [vmem:[#allocation2 + $0x2e0] sm:$0xff]
  %v548 = vld [vmem:[#allocation2 + $0x2e8] sm:$0xff]
  %v549 = vld [vmem:[#allocation2 + $0x2f0] sm:$0xff]
  %v550 = vld [vmem:[#allocation2 + $0x2f8] sm:$0xff]
  %v551 = vld [vmem:[#allocation2 + $0x300] sm:$0xff]
  %v552 = vld [vmem:[#allocation2 + $0x308] sm:$0xff]
  %v553 = vld [vmem:[#allocation2 + $0x310] sm:$0xff]
  %v554 = vld [vmem:[#allocation2 + $0x318] sm:$0xff]
  %v555 = vld [vmem:[#allocation2 + $0x320] sm:$0xff]
  %v556 = vld [vmem:[#allocation2 + $0x328] sm:$0xff]
  %v557 = vld [vmem:[#allocation2 + $0x330] sm:$0xff]
  %v558 = vld [vmem:[#allocation2 + $0x338] sm:$0xff]
  %v559 = vld [vmem:[#allocation2 + $0x340] sm:$0xff]
  %v560 = vld [vmem:[#allocation2 + $0x348] sm:$0xff]
  %v561 = vld [vmem:[#allocation2 + $0x350] sm:$0xff]
  %v562 = vld [vmem:[#allocation2 + $0x358] sm:$0xff]
  %vm563 = vcmask 588800
  %v565 = vsel %vm563, %v44, 0
  %567 = vmatprep.subr.mxu0 %v456
  %568 = vmatpush1.msra.mxu0 %v455
  %569 = vmatprep.subr.mxu0 %v468
  %570 = vmatpush1.msra.mxu0 %v467
  %571 = vmatprep.subr.mxu0 %v480
  %572 = vmatpush1.msra.mxu0 %v479
  %573 = vmatprep.subr.mxu0 %v492
  %574 = vmatpush1.msra.mxu0 %v491
  %575 = vmatprep.subr.mxu0 %v504
  %576 = vmatpush1.msra.mxu0 %v503
  %577 = vmatprep.subr.mxu0 %v516
  %578 = vmatpush1.msra.mxu0 %v515
  %579 = vmatprep.subr.mxu0 %v528
  %580 = vmatpush1.msra.mxu0 %v527
  %581 = vmatprep.subr.mxu0 %v540
  %582 = vmatpush1.msra.mxu0 %v539
  %583 = vmatprep.subr.mxu0 %v552
  %584 = vmatpush1.msra.mxu0 %v551
  %585 = vmatprep.subr.mxu0 0.0
  %586 = vmatpush1.msra.mxu0 0.0
  %587 = vmatprep.subr.mxu0 0.0
  %588 = vmatpush1.msra.mxu0 0.0
  %589 = vmatprep.subr.mxu0 0.0
  %590 = vmatpush1.msra.mxu0 0.0
  %591 = vmatprep.subr.mxu0 0.0
  %592 = vmatpush1.msra.mxu0 0.0
  %593 = vmatprep.subr.mxu0 0.0
  %594 = vmatpush1.msra.mxu0 0.0
  %595 = vmatprep.subr.mxu0 0.0
  %596 = vmatpush1.msra.mxu0 0.0
  %597 = vmatprep.subr.mxu0 0.0
  %598 = vmatpush1.msra.mxu0 0.0
  %599 = vmatprep.subr.mxu0 0.0
  %600 = vmatpush1.msra.mxu0 0.0
  %601 = vmatprep.subr.mxu0 0.0
  %602 = vmatpush1.msra.mxu0 0.0
  %603 = vmatprep.subr.mxu0 0.0
  %604 = vmatpush1.msra.mxu0 0.0
  %605 = vmatprep.subr.mxu0 0.0
  %606 = vmatpush1.msra.mxu0 0.0
  %607 = vmatprep.subr.mxu0 0.0
  %608 = vmatpush1.msra.mxu0 0.0
  %609 = vmatprep.subr.mxu0 0.0
  %610 = vmatpush1.msra.mxu0 0.0
  %611 = vmatprep.subr.mxu0 0.0
  %612 = vmatpush1.msra.mxu0 0.0
  %613 = vmatprep.subr.mxu0 0.0
  %614 = vmatpush1.msra.mxu0 0.0
  %615 = vmatprep.subr.mxu0 0.0
  %616 = vmatpush1.msra.mxu0 0.0
  %617 = vmatprep.subr.mxu0 0.0
  %618 = vmatpush1.msra.mxu0 0.0
  %619 = vmatprep.subr.mxu0 0.0
  %620 = vmatpush1.msra.mxu0 0.0
  %621 = vmatprep.subr.mxu0 0.0
  %622 = vmatpush1.msra.mxu0 0.0
  %623 = vmatprep.subr.mxu0 0.0
  %624 = vmatpush1.msra.mxu0 0.0
  %625 = vmatprep.subr.mxu0 0.0
  %626 = vmatpush1.msra.mxu0 0.0
  %627 = vmatprep.subr.mxu0 0.0
  %628 = vmatpush1.msra.mxu0 0.0
  %629 = vmatprep.subr.mxu0 0.0
  %630 = vmatpush1.msra.mxu0 0.0
  %631 = vmatprep.mubr.f32.mxu0 0.0
  %632 = vmatmul.mubr.f32.gmra.mrb[0].mxu0 %v565
  %v633 = vpop.f32.mrb[0].mxu0
  %v634 = vadd.f32 0.0, %v633
  %v635 = vpop.f32.mrb[0].mxu0
  %v636 = vadd.f32 0.0, %v635
  %637 = vdwg.mxu0
  %638 = vmatprep.subr.mxu0 %v458
  %639 = vmatpush1.msra.mxu0 %v457
  %640 = vmatprep.subr.mxu0 %v470
  %641 = vmatpush1.msra.mxu0 %v469
  %642 = vmatprep.subr.mxu0 %v482
  %643 = vmatpush1.msra.mxu0 %v481
  %644 = vmatprep.subr.mxu0 %v494
  %645 = vmatpush1.msra.mxu0 %v493
  %646 = vmatprep.subr.mxu0 %v506
  %647 = vmatpush1.msra.mxu0 %v505
  %648 = vmatprep.subr.mxu0 %v518
  %649 = vmatpush1.msra.mxu0 %v517
  %650 = vmatprep.subr.mxu0 %v530
  %651 = vmatpush1.msra.mxu0 %v529
  %652 = vmatprep.subr.mxu0 %v542
  %653 = vmatpush1.msra.mxu0 %v541
  %654 = vmatprep.subr.mxu0 %v554
  %655 = vmatpush1.msra.mxu0 %v553
  %656 = vmatprep.subr.mxu0 0.0
  %657 = vmatpush1.msra.mxu0 0.0
  %658 = vmatprep.subr.mxu0 0.0
  %659 = vmatpush1.msra.mxu0 0.0
  %660 = vmatprep.subr.mxu0 0.0
  %661 = vmatpush1.msra.mxu0 0.0
  %662 = vmatprep.subr.mxu0 0.0
  %663 = vmatpush1.msra.mxu0 0.0
  %664 = vmatprep.subr.mxu0 0.0
  %665 = vmatpush1.msra.mxu0 0.0
  %666 = vmatprep.subr.mxu0 0.0
  %667 = vmatpush1.msra.mxu0 0.0
  %668 = vmatprep.subr.mxu0 0.0
  %669 = vmatpush1.msra.mxu0 0.0
  %670 = vmatprep.subr.mxu0 0.0
  %671 = vmatpush1.msra.mxu0 0.0
  %672 = vmatprep.subr.mxu0 0.0
  %673 = vmatpush1.msra.mxu0 0.0
  %674 = vmatprep.subr.mxu0 0.0
  %675 = vmatpush1.msra.mxu0 0.0
  %676 = vmatprep.subr.mxu0 0.0
  %677 = vmatpush1.msra.mxu0 0.0
  %678 = vmatprep.subr.mxu0 0.0
  %679 = vmatpush1.msra.mxu0 0.0
  %680 = vmatprep.subr.mxu0 0.0
  %681 = vmatpush1.msra.mxu0 0.0
  %682 = vmatprep.subr.mxu0 0.0
  %683 = vmatpush1.msra.mxu0 0.0
  %684 = vmatprep.subr.mxu0 0.0
  %685 = vmatpush1.msra.mxu0 0.0
  %686 = vmatprep.subr.mxu0 0.0
  %687 = vmatpush1.msra.mxu0 0.0
  %688 = vmatprep.subr.mxu0 0.0
  %689 = vmatpush1.msra.mxu0 0.0
  %690 = vmatprep.subr.mxu0 0.0
  %691 = vmatpush1.msra.mxu0 0.0
  %692 = vmatprep.subr.mxu0 0.0
  %693 = vmatpush1.msra.mxu0 0.0
  %694 = vmatprep.subr.mxu0 0.0
  %695 = vmatpush1.msra.mxu0 0.0
  %696 = vmatprep.subr.mxu0 0.0
  %697 = vmatpush1.msra.mxu0 0.0
  %698 = vmatprep.subr.mxu0 0.0
  %699 = vmatpush1.msra.mxu0 0.0
  %700 = vmatprep.subr.mxu0 0.0
  %701 = vmatpush1.msra.mxu0 0.0
  %702 = vmatprep.mubr.f32.mxu0 0.0
  %703 = vmatmul.mubr.f32.gmra.mrb[0].mxu0 %v565
  %v704 = vpop.f32.mrb[0].mxu0
  %v705 = vadd.f32 0.0, %v704
  %v706 = vpop.f32.mrb[0].mxu0
  %v707 = vadd.f32 0.0, %v706
  %708 = vdwg.mxu0
  %709 = vmatprep.subr.mxu0 %v460
  %710 = vmatpush1.msra.mxu0 %v459
  %711 = vmatprep.subr.mxu0 %v472
  %712 = vmatpush1.msra.mxu0 %v471
  %713 = vmatprep.subr.mxu0 %v484
  %714 = vmatpush1.msra.mxu0 %v483
  %715 = vmatprep.subr.mxu0 %v496
  %716 = vmatpush1.msra.mxu0 %v495
  %717 = vmatprep.subr.mxu0 %v508
  %718 = vmatpush1.msra.mxu0 %v507
  %719 = vmatprep.subr.mxu0 %v520
  %720 = vmatpush1.msra.mxu0 %v519
  %721 = vmatprep.subr.mxu0 %v532
  %722 = vmatpush1.msra.mxu0 %v531
  %723 = vmatprep.subr.mxu0 %v544
  %724 = vmatpush1.msra.mxu0 %v543
  %725 = vmatprep.subr.mxu0 %v556
  %726 = vmatpush1.msra.mxu0 %v555
  %727 = vmatprep.subr.mxu0 0.0
  %728 = vmatpush1.msra.mxu0 0.0
  %729 = vmatprep.subr.mxu0 0.0
  %730 = vmatpush1.msra.mxu0 0.0
  %731 = vmatprep.subr.mxu0 0.0
  %732 = vmatpush1.msra.mxu0 0.0
  %733 = vmatprep.subr.mxu0 0.0
  %734 = vmatpush1.msra.mxu0 0.0
  %735 = vmatprep.subr.mxu0 0.0
  %736 = vmatpush1.msra.mxu0 0.0
  %737 = vmatprep.subr.mxu0 0.0
  %738 = vmatpush1.msra.mxu0 0.0
  %739 = vmatprep.subr.mxu0 0.0
  %740 = vmatpush1.msra.mxu0 0.0
  %741 = vmatprep.subr.mxu0 0.0
  %742 = vmatpush1.msra.mxu0 0.0
  %743 = vmatprep.subr.mxu0 0.0
  %744 = vmatpush1.msra.mxu0 0.0
  %745 = vmatprep.subr.mxu0 0.0
  %746 = vmatpush1.msra.mxu0 0.0
  %747 = vmatprep.subr.mxu0 0.0
  %748 = vmatpush1.msra.mxu0 0.0
  %749 = vmatprep.subr.mxu0 0.0
  %750 = vmatpush1.msra.mxu0 0.0
  %751 = vmatprep.subr.mxu0 0.0
  %752 = vmatpush1.msra.mxu0 0.0
  %753 = vmatprep.subr.mxu0 0.0
  %754 = vmatpush1.msra.mxu0 0.0
  %755 = vmatprep.subr.mxu0 0.0
  %756 = vmatpush1.msra.mxu0 0.0
  %757 = vmatprep.subr.mxu0 0.0
  %758 = vmatpush1.msra.mxu0 0.0
  %759 = vmatprep.subr.mxu0 0.0
  %760 = vmatpush1.msra.mxu0 0.0
  %761 = vmatprep.subr.mxu0 0.0
  %762 = vmatpush1.msra.mxu0 0.0
  %763 = vmatprep.subr.mxu0 0.0
  %764 = vmatpush1.msra.mxu0 0.0
  %765 = vmatprep.subr.mxu0 0.0
  %766 = vmatpush1.msra.mxu0 0.0
  %767 = vmatprep.subr.mxu0 0.0
  %768 = vmatpush1.msra.mxu0 0.0
  %769 = vmatprep.subr.mxu0 0.0
  %770 = vmatpush1.msra.mxu0 0.0
  %771 = vmatprep.subr.mxu0 0.0
  %772 = vmatpush1.msra.mxu0 0.0
  %773 = vmatprep.mubr.f32.mxu0 0.0
  %774 = vmatmul.mubr.f32.gmra.mrb[0].mxu0 %v565
  %v775 = vpop.f32.mrb[0].mxu0
  %v776 = vadd.f32 0.0, %v775
  %v777 = vpop.f32.mrb[0].mxu0
  %v778 = vadd.f32 0.0, %v777
  %779 = vdwg.mxu0
  %780 = vmatprep.subr.mxu0 %v462
  %781 = vmatpush1.msra.mxu0 %v461
  %782 = vmatprep.subr.mxu0 %v474
  %783 = vmatpush1.msra.mxu0 %v473
  %784 = vmatprep.subr.mxu0 %v486
  %785 = vmatpush1.msra.mxu0 %v485
  %786 = vmatprep.subr.mxu0 %v498
  %787 = vmatpush1.msra.mxu0 %v497
  %788 = vmatprep.subr.mxu0 %v510
  %789 = vmatpush1.msra.mxu0 %v509
  %790 = vmatprep.subr.mxu0 %v522
  %791 = vmatpush1.msra.mxu0 %v521
  %792 = vmatprep.subr.mxu0 %v534
  %793 = vmatpush1.msra.mxu0 %v533
  %794 = vmatprep.subr.mxu0 %v546
  %795 = vmatpush1.msra.mxu0 %v545
  %796 = vmatprep.subr.mxu0 %v558
  %797 = vmatpush1.msra.mxu0 %v557
  %798 = vmatprep.subr.mxu0 0.0
  %799 = vmatpush1.msra.mxu0 0.0
  %800 = vmatprep.subr.mxu0 0.0
  %801 = vmatpush1.msra.mxu0 0.0
  %802 = vmatprep.subr.mxu0 0.0
  %803 = vmatpush1.msra.mxu0 0.0
  %804 = vmatprep.subr.mxu0 0.0
  %805 = vmatpush1.msra.mxu0 0.0
  %806 = vmatprep.subr.mxu0 0.0
  %807 = vmatpush1.msra.mxu0 0.0
  %808 = vmatprep.subr.mxu0 0.0
  %809 = vmatpush1.msra.mxu0 0.0
  %810 = vmatprep.subr.mxu0 0.0
  %811 = vmatpush1.msra.mxu0 0.0
  %812 = vmatprep.subr.mxu0 0.0
  %813 = vmatpush1.msra.mxu0 0.0
  %814 = vmatprep.subr.mxu0 0.0
  %815 = vmatpush1.msra.mxu0 0.0
  %816 = vmatprep.subr.mxu0 0.0
  %817 = vmatpush1.msra.mxu0 0.0
  %818 = vmatprep.subr.mxu0 0.0
  %819 = vmatpush1.msra.mxu0 0.0
  %820 = vmatprep.subr.mxu0 0.0
  %821 = vmatpush1.msra.mxu0 0.0
  %822 = vmatprep.subr.mxu0 0.0
  %823 = vmatpush1.msra.mxu0 0.0
  %824 = vmatprep.subr.mxu0 0.0
  %825 = vmatpush1.msra.mxu0 0.0
  %826 = vmatprep.subr.mxu0 0.0
  %827 = vmatpush1.msra.mxu0 0.0
  %828 = vmatprep.subr.mxu0 0.0
  %829 = vmatpush1.msra.mxu0 0.0
  %830 = vmatprep.subr.mxu0 0.0
  %831 = vmatpush1.msra.mxu0 0.0
  %832 = vmatprep.subr.mxu0 0.0
  %833 = vmatpush1.msra.mxu0 0.0
  %834 = vmatprep.subr.mxu0 0.0
  %835 = vmatpush1.msra.mxu0 0.0
  %836 = vmatprep.subr.mxu0 0.0
  %837 = vmatpush1.msra.mxu0 0.0
  %838 = vmatprep.subr.mxu0 0.0
  %839 = vmatpush1.msra.mxu0 0.0
  %840 = vmatprep.subr.mxu0 0.0
  %841 = vmatpush1.msra.mxu0 0.0
  %842 = vmatprep.subr.mxu0 0.0
  %843 = vmatpush1.msra.mxu0 0.0
  %844 = vmatprep.mubr.f32.mxu0 0.0
  %845 = vmatmul.mubr.f32.gmra.mrb[0].mxu0 %v565
  %v846 = vpop.f32.mrb[0].mxu0
  %v847 = vadd.f32 0.0, %v846
  %v848 = vpop.f32.mrb[0].mxu0
  %v849 = vadd.f32 0.0, %v848
  %850 = vdwg.mxu0
  %851 = vmatprep.subr.mxu0 %v464
  %852 = vmatpush1.msra.mxu0 %v463
  %853 = vmatprep.subr.mxu0 %v476
  %854 = vmatpush1.msra.mxu0 %v475
  %855 = vmatprep.subr.mxu0 %v488
  %856 = vmatpush1.msra.mxu0 %v487
  %857 = vmatprep.subr.mxu0 %v500
  %858 = vmatpush1.msra.mxu0 %v499
  %859 = vmatprep.subr.mxu0 %v512
  %860 = vmatpush1.msra.mxu0 %v511
  %861 = vmatprep.subr.mxu0 %v524
  %862 = vmatpush1.msra.mxu0 %v523
  %863 = vmatprep.subr.mxu0 %v536
  %864 = vmatpush1.msra.mxu0 %v535
  %865 = vmatprep.subr.mxu0 %v548
  %866 = vmatpush1.msra.mxu0 %v547
  %867 = vmatprep.subr.mxu0 %v560
  %868 = vmatpush1.msra.mxu0 %v559
  %869 = vmatprep.subr.mxu0 0.0
  %870 = vmatpush1.msra.mxu0 0.0
  %871 = vmatprep.subr.mxu0 0.0
  %872 = vmatpush1.msra.mxu0 0.0
  %873 = vmatprep.subr.mxu0 0.0
  %874 = vmatpush1.msra.mxu0 0.0
  %875 = vmatprep.subr.mxu0 0.0
  %876 = vmatpush1.msra.mxu0 0.0
  %877 = vmatprep.subr.mxu0 0.0
  %878 = vmatpush1.msra.mxu0 0.0
  %879 = vmatprep.subr.mxu0 0.0
  %880 = vmatpush1.msra.mxu0 0.0
  %881 = vmatprep.subr.mxu0 0.0
  %882 = vmatpush1.msra.mxu0 0.0
  %883 = vmatprep.subr.mxu0 0.0
  %884 = vmatpush1.msra.mxu0 0.0
  %885 = vmatprep.subr.mxu0 0.0
  %886 = vmatpush1.msra.mxu0 0.0
  %887 = vmatprep.subr.mxu0 0.0
  %888 = vmatpush1.msra.mxu0 0.0
  %889 = vmatprep.subr.mxu0 0.0
  %890 = vmatpush1.msra.mxu0 0.0
  %891 = vmatprep.subr.mxu0 0.0
  %892 = vmatpush1.msra.mxu0 0.0
  %893 = vmatprep.subr.mxu0 0.0
  %894 = vmatpush1.msra.mxu0 0.0
  %895 = vmatprep.subr.mxu0 0.0
  %896 = vmatpush1.msra.mxu0 0.0
  %897 = vmatprep.subr.mxu0 0.0
  %898 = vmatpush1.msra.mxu0 0.0
  %899 = vmatprep.subr.mxu0 0.0
  %900 = vmatpush1.msra.mxu0 0.0
  %901 = vmatprep.subr.mxu0 0.0
  %902 = vmatpush1.msra.mxu0 0.0
  %903 = vmatprep.subr.mxu0 0.0
  %904 = vmatpush1.msra.mxu0 0.0
  %905 = vmatprep.subr.mxu0 0.0
  %906 = vmatpush1.msra.mxu0 0.0
  %907 = vmatprep.subr.mxu0 0.0
  %908 = vmatpush1.msra.mxu0 0.0
  %909 = vmatprep.subr.mxu0 0.0
  %910 = vmatpush1.msra.mxu0 0.0
  %911 = vmatprep.subr.mxu0 0.0
  %912 = vmatpush1.msra.mxu0 0.0
  %913 = vmatprep.subr.mxu0 0.0
  %914 = vmatpush1.msra.mxu0 0.0
  %915 = vmatprep.mubr.f32.mxu0 0.0
  %916 = vmatmul.mubr.f32.gmra.mrb[0].mxu0 %v565
  %v917 = vpop.f32.mrb[0].mxu0
  %v918 = vadd.f32 0.0, %v917
  %v919 = vpop.f32.mrb[0].mxu0
  %v920 = vadd.f32 0.0, %v919
  %921 = vdwg.mxu0
  %922 = vmatprep.subr.mxu0 %v466
  %923 = vmatpush1.msra.mxu0 %v465
  %924 = vmatprep.subr.mxu0 %v478
  %925 = vmatpush1.msra.mxu0 %v477
  %926 = vmatprep.subr.mxu0 %v490
  %927 = vmatpush1.msra.mxu0 %v489
  %928 = vmatprep.subr.mxu0 %v502
  %929 = vmatpush1.msra.mxu0 %v501
  %930 = vmatprep.subr.mxu0 %v514
  %931 = vmatpush1.msra.mxu0 %v513
  %932 = vmatprep.subr.mxu0 %v526
  %933 = vmatpush1.msra.mxu0 %v525
  %934 = vmatprep.subr.mxu0 %v538
  %935 = vmatpush1.msra.mxu0 %v537
  %936 = vmatprep.subr.mxu0 %v550
  %937 = vmatpush1.msra.mxu0 %v549
  %938 = vmatprep.subr.mxu0 %v562
  %939 = vmatpush1.msra.mxu0 %v561
  %940 = vmatprep.subr.mxu0 0.0
  %941 = vmatpush1.msra.mxu0 0.0
  %942 = vmatprep.subr.mxu0 0.0
  %943 = vmatpush1.msra.mxu0 0.0
  %944 = vmatprep.subr.mxu0 0.0
  %945 = vmatpush1.msra.mxu0 0.0
  %946 = vmatprep.subr.mxu0 0.0
  %947 = vmatpush1.msra.mxu0 0.0
  %948 = vmatprep.subr.mxu0 0.0
  %949 = vmatpush1.msra.mxu0 0.0
  %950 = vmatprep.subr.mxu0 0.0
  %951 = vmatpush1.msra.mxu0 0.0
  %952 = vmatprep.subr.mxu0 0.0
  %953 = vmatpush1.msra.mxu0 0.0
  %954 = vmatprep.subr.mxu0 0.0
  %955 = vmatpush1.msra.mxu0 0.0
  %956 = vmatprep.subr.mxu0 0.0
  %957 = vmatpush1.msra.mxu0 0.0
  %958 = vmatprep.subr.mxu0 0.0
  %959 = vmatpush1.msra.mxu0 0.0
  %960 = vmatprep.subr.mxu0 0.0
  %961 = vmatpush1.msra.mxu0 0.0
  %962 = vmatprep.subr.mxu0 0.0
  %963 = vmatpush1.msra.mxu0 0.0
  %964 = vmatprep.subr.mxu0 0.0
  %965 = vmatpush1.msra.mxu0 0.0
  %966 = vmatprep.subr.mxu0 0.0
  %967 = vmatpush1.msra.mxu0 0.0
  %968 = vmatprep.subr.mxu0 0.0
  %969 = vmatpush1.msra.mxu0 0.0
  %970 = vmatprep.subr.mxu0 0.0
  %971 = vmatpush1.msra.mxu0 0.0
  %972 = vmatprep.subr.mxu0 0.0
  %973 = vmatpush1.msra.mxu0 0.0
  %974 = vmatprep.subr.mxu0 0.0
  %975 = vmatpush1.msra.mxu0 0.0
  %976 = vmatprep.subr.mxu0 0.0
  %977 = vmatpush1.msra.mxu0 0.0
  %978 = vmatprep.subr.mxu0 0.0
  %979 = vmatpush1.msra.mxu0 0.0
  %980 = vmatprep.subr.mxu0 0.0
  %981 = vmatpush1.msra.mxu0 0.0
  %982 = vmatprep.subr.mxu0 0.0
  %983 = vmatpush1.msra.mxu0 0.0
  %984 = vmatprep.subr.mxu0 0.0
  %985 = vmatpush1.msra.mxu0 0.0
  %986 = vmatprep.mubr.f32.mxu0 0.0
  %987 = vmatmul.mubr.f32.gmra.mrb[0].mxu0 %v565
  %v988 = vpop.f32.mrb[0].mxu0
  %v989 = vadd.f32 0.0, %v988
  %v990 = vpop.f32.mrb[0].mxu0
  %v991 = vadd.f32 0.0, %v990
  %992 = vdwg.mxu0
  %v995 = vlaneseq
  %v996 = vshrl.u32 %v995, 7
  %v997 = vsub.s32 0, %v996
  %v998 = vrot.slane %v47, %v997
  %v999 = vlaneseq
  %v1000 = vshrl.u32 %v999, 7
  %v1001 = vsub.s32 1, %v1000
  %v1002 = vrot.slane %v47, %v1001
  %v1003 = vlaneseq
  %v1004 = vshrl.u32 %v1003, 7
  %v1005 = vsub.s32 2, %v1004
  %v1006 = vrot.slane %v47, %v1005
  %v1007 = vlaneseq
  %v1008 = vshrl.u32 %v1007, 7
  %v1009 = vsub.s32 3, %v1008
  %v1010 = vrot.slane %v47, %v1009
  %v1011 = vlaneseq
  %v1012 = vshrl.u32 %v1011, 7
  %v1013 = vsub.s32 4, %v1012
  %v1014 = vrot.slane %v47, %v1013
  %v1015 = vlaneseq
  %v1016 = vshrl.u32 %v1015, 7
  %v1017 = vsub.s32 5, %v1016
  %v1018 = vrot.slane %v47, %v1017
  %v1019 = vlaneseq
  %v1020 = vshrl.u32 %v1019, 7
  %v1021 = vsub.s32 6, %v1020
  %v1022 = vrot.slane %v47, %v1021
  %v1023 = vlaneseq
  %v1024 = vshrl.u32 %v1023, 7
  %v1025 = vsub.s32 7, %v1024
  %v1026 = vrot.slane %v47, %v1025
  %v1027 = vlaneseq
  %v1028 = vshrl.u32 %v1027, 7
  %v1029 = vsub.s32 0, %v1028
  %v1030 = vrot.slane %v48, %v1029
  %v1031 = vlaneseq
  %v1032 = vshrl.u32 %v1031, 7
  %v1033 = vsub.s32 1, %v1032
  %v1034 = vrot.slane %v48, %v1033
  %v1035 = vlaneseq
  %v1036 = vshrl.u32 %v1035, 7
  %v1037 = vsub.s32 2, %v1036
  %v1038 = vrot.slane %v48, %v1037
  %v1039 = vlaneseq
  %v1040 = vshrl.u32 %v1039, 7
  %v1041 = vsub.s32 3, %v1040
  %v1042 = vrot.slane %v48, %v1041
  %v1055 = vmul.f32 %v634, %v998
  %v1056 = vmul.f32 %v636, %v1002
  %v1057 = vmul.f32 %v705, %v1006
  %v1058 = vmul.f32 %v707, %v1010
  %v1059 = vmul.f32 %v776, %v1014
  %v1060 = vmul.f32 %v778, %v1018
  %v1061 = vmul.f32 %v847, %v1022
  %v1062 = vmul.f32 %v849, %v1026
  %v1063 = vmul.f32 %v918, %v1030
  %v1064 = vmul.f32 %v920, %v1034
  %v1065 = vmul.f32 %v989, %v1038
  %v1066 = vmul.f32 %v991, %v1042
  %v1067 = vadd.f32 %v1055, %v1056
  %v1068 = vadd.f32 %v1067, %v1057
  %v1069 = vadd.f32 %v1068, %v1058
  %v1070 = vadd.f32 %v1069, %v1059
  %v1071 = vadd.f32 %v1070, %v1060
  %v1072 = vadd.f32 %v1071, %v1061
  %v1073 = vadd.f32 %v1072, %v1062
  %v1074 = vadd.f32 %v1073, %v1063
  %v1075 = vadd.f32 %v1074, %v1064
  %v1076 = vadd.f32 %v1075, %v1065
  %v1077 = vadd.f32 %v1076, %v1066
  %1078 = vadd.xlane.f32.xlu0 %v1077
  %v1079 = vpop.xlane.xlu0 %1078
  %v1080 = vmul.f32 %v1079, 0.0008503401
  %v1081 = vmul.f32 %v1055, %v634
  %v1082 = vmul.f32 %v1056, %v636
  %v1083 = vmul.f32 %v1057, %v705
  %v1084 = vmul.f32 %v1058, %v707
  %v1085 = vmul.f32 %v1059, %v776
  %v1086 = vmul.f32 %v1060, %v778
  %v1087 = vmul.f32 %v1061, %v847
  %v1088 = vmul.f32 %v1062, %v849
  %v1089 = vmul.f32 %v1063, %v918
  %v1090 = vmul.f32 %v1064, %v920
  %v1091 = vmul.f32 %v1065, %v989
  %v1092 = vmul.f32 %v1066, %v991
  %v1093 = vadd.f32 %v1081, %v1082
  %v1094 = vadd.f32 %v1093, %v1083
  %v1095 = vadd.f32 %v1094, %v1084
  %v1096 = vadd.f32 %v1095, %v1085
  %v1097 = vadd.f32 %v1096, %v1086
  %v1098 = vadd.f32 %v1097, %v1087
  %v1099 = vadd.f32 %v1098, %v1088
  %v1100 = vadd.f32 %v1099, %v1089
  %v1101 = vadd.f32 %v1100, %v1090
  %v1102 = vadd.f32 %v1101, %v1091
  %v1103 = vadd.f32 %v1102, %v1092
  %1104 = vadd.xlane.f32.xlu0 %v1103
  %v1105 = vpop.xlane.xlu0 %1104
  %v1106 = vmul.f32 %v1105, 0.0008503401
  %v1107 = vmul.f32 %v1080, %v1080
  %v1108 = vsub.f32 %v1106, %v1107
  %v1109 = vadd.f32 %v1108, 1e-05
  %v1110 = vrsqrt.pop %v1109
  %v1111 = vmul.f32 %v45, %v1110
  %v1112 = vmul.f32 %v1080, %v1111
  %v1113 = vsub.f32 %v46, %v1112
  %1115 = vset.pattern.permute.xlu0 0
  %1116 = vperm.xlu0 %1115, %v1111
  %v1117 = vpop.permute.xlu0 %1116
  %v1119 = vmul.f32 %v634, %v1117
  %v1120 = vmul.f32 %v636, %v1117
  %v1121 = vmul.f32 %v705, %v1117
  %v1122 = vmul.f32 %v707, %v1117
  %v1123 = vmul.f32 %v776, %v1117
  %v1124 = vmul.f32 %v778, %v1117
  %v1125 = vmul.f32 %v847, %v1117
  %v1126 = vmul.f32 %v849, %v1117
  %v1127 = vmul.f32 %v918, %v1117
  %v1128 = vmul.f32 %v920, %v1117
  %v1129 = vmul.f32 %v989, %v1117
  %v1130 = vmul.f32 %v991, %v1117
  %1132 = vset.pattern.permute.xlu0 0
  %1133 = vperm.xlu0 %1132, %v1113
  %v1134 = vpop.permute.xlu0 %1133
  %v1136 = vadd.f32 %v1119, %v1134
  %v1137 = vadd.f32 %v1120, %v1134
  %v1138 = vadd.f32 %v1121, %v1134
  %v1139 = vadd.f32 %v1122, %v1134
  %v1140 = vadd.f32 %v1123, %v1134
  %v1141 = vadd.f32 %v1124, %v1134
  %v1142 = vadd.f32 %v1125, %v1134
  %v1143 = vadd.f32 %v1126, %v1134
  %v1144 = vadd.f32 %v1127, %v1134
  %v1145 = vadd.f32 %v1128, %v1134
  %v1146 = vadd.f32 %v1129, %v1134
  %v1147 = vadd.f32 %v1130, %v1134
  %v1148 = vmax.f32 %v1136, 0.0
  %v1149 = vmax.f32 %v1137, 0.0
  %v1150 = vmax.f32 %v1138, 0.0
  %v1151 = vmax.f32 %v1139, 0.0
  %v1152 = vmax.f32 %v1140, 0.0
  %v1153 = vmax.f32 %v1141, 0.0
  %v1154 = vmax.f32 %v1142, 0.0
  %v1155 = vmax.f32 %v1143, 0.0
  %v1156 = vmax.f32 %v1144, 0.0
  %v1157 = vmax.f32 %v1145, 0.0
  %v1158 = vmax.f32 %v1146, 0.0
  %v1159 = vmax.f32 %v1147, 0.0
  %v1160 = vld [vmem:[%s4] sm:$0xff]
  %v1161 = vld [vmem:[%s5] sm:$0xff]
  %v1162 = vld [vmem:[%s6] sm:$0xff]
  %v1163 = vld [vmem:[%s8] sm:$0xff]
  %v1164 = vld [vmem:[%s8 + $0x8] sm:$0xf]
  %1165 = vst [vmem:[#allocation2] sm:$0xff] %v1148
  %1166 = vst [vmem:[#allocation2 + $0x8] sm:$0xff] %v1149
  %1167 = vst [vmem:[#allocation2 + $0x10] sm:$0xff] %v1150
  %1168 = vst [vmem:[#allocation2 + $0x18] sm:$0xff] %v1151
  %1169 = vst [vmem:[#allocation2 + $0x20] sm:$0xff] %v1152
  %1170 = vst [vmem:[#allocation2 + $0x28] sm:$0xff] %v1153
  %1171 = vst [vmem:[#allocation2 + $0x30] sm:$0xff] %v1154
  %1172 = vst [vmem:[#allocation2 + $0x38] sm:$0xff] %v1155
  %1173 = vst [vmem:[#allocation2 + $0x40] sm:$0xff] %v1156
  %1174 = vst [vmem:[#allocation2 + $0x48] sm:$0xff] %v1157
  %1175 = vst [vmem:[#allocation2 + $0x50] sm:$0xff] %v1158
  %1176 = vst [vmem:[#allocation2 + $0x58] sm:$0xff] %v1159
  %1177 = vrot.lane.b32.xlu0 %v1148, 127
  %v1178 = vpop.permute.xlu0 %1177
  %1179 = vrot.lane.b32.xlu0 %v1149, 127
  %v1180 = vpop.permute.xlu0 %1179
  %1181 = vrot.lane.b32.xlu0 %v1150, 127
  %v1182 = vpop.permute.xlu0 %1181
  %1183 = vrot.lane.b32.xlu0 %v1151, 127
  %v1184 = vpop.permute.xlu0 %1183
  %1185 = vrot.lane.b32.xlu0 %v1152, 127
  %v1186 = vpop.permute.xlu0 %1185
  %1187 = vrot.lane.b32.xlu0 %v1153, 127
  %v1188 = vpop.permute.xlu0 %1187
  %1189 = vrot.lane.b32.xlu0 %v1154, 127
  %v1190 = vpop.permute.xlu0 %1189
  %1191 = vrot.lane.b32.xlu0 %v1155, 127
  %v1192 = vpop.permute.xlu0 %1191
  %1193 = vrot.lane.b32.xlu0 %v1156, 127
  %v1194 = vpop.permute.xlu0 %1193
  %1195 = vrot.lane.b32.xlu0 %v1157, 127
  %v1196 = vpop.permute.xlu0 %1195
  %1197 = vrot.lane.b32.xlu0 %v1158, 127
  %v1198 = vpop.permute.xlu0 %1197
  %1199 = vrot.lane.b32.xlu0 %v1159, 127
  %v1200 = vpop.permute.xlu0 %1199
  %v1201 = vsel %vm87, %v1198, %v1200
  %v1202 = vsel %vm87, %v1196, %v1198
  %v1203 = vsel %vm87, %v1194, %v1196
  %v1204 = vsel %vm87, %v1192, %v1194
  %v1205 = vsel %vm87, %v1190, %v1192
  %v1206 = vsel %vm87, %v1188, %v1190
  %v1207 = vsel %vm87, %v1186, %v1188
  %v1208 = vsel %vm87, %v1184, %v1186
  %v1209 = vsel %vm87, %v1182, %v1184
  %v1210 = vsel %vm87, %v1180, %v1182
  %v1211 = vsel %vm87, %v1178, %v1180
  %v1212 = vsel %vm87, %v1200, %v1178
  %1213 = vst [vmem:[#allocation2 + $0x60] sm:$0xff] %v1211
  %1214 = vst [vmem:[#allocation2 + $0x68] sm:$0xff] %v1210
  %1215 = vst [vmem:[#allocation2 + $0x70] sm:$0xff] %v1209
  %1216 = vst [vmem:[#allocation2 + $0x78] sm:$0xff] %v1208
  %1217 = vst [vmem:[#allocation2 + $0x80] sm:$0xff] %v1207
  %1218 = vst [vmem:[#allocation2 + $0x88] sm:$0xff] %v1206
  %1219 = vst [vmem:[#allocation2 + $0x90] sm:$0xff] %v1205
  %1220 = vst [vmem:[#allocation2 + $0x98] sm:$0xff] %v1204
  %1221 = vst [vmem:[#allocation2 + $0xa0] sm:$0xff] %v1203
  %1222 = vst [vmem:[#allocation2 + $0xa8] sm:$0xff] %v1202
  %1223 = vst [vmem:[#allocation2 + $0xb0] sm:$0xff] %v1201
  %1224 = vst [vmem:[#allocation2 + $0xb8] sm:$0xff] %v1212
  %1225 = vrot.lane.b32.xlu0 %v1148, 126
  %v1226 = vpop.permute.xlu0 %1225
  %1227 = vrot.lane.b32.xlu0 %v1149, 126
  %v1228 = vpop.permute.xlu0 %1227
  %1229 = vrot.lane.b32.xlu0 %v1150, 126
  %v1230 = vpop.permute.xlu0 %1229
  %1231 = vrot.lane.b32.xlu0 %v1151, 126
  %v1232 = vpop.permute.xlu0 %1231
  %1233 = vrot.lane.b32.xlu0 %v1152, 126
  %v1234 = vpop.permute.xlu0 %1233
  %1235 = vrot.lane.b32.xlu0 %v1153, 126
  %v1236 = vpop.permute.xlu0 %1235
  %1237 = vrot.lane.b32.xlu0 %v1154, 126
  %v1238 = vpop.permute.xlu0 %1237
  %1239 = vrot.lane.b32.xlu0 %v1155, 126
  %v1240 = vpop.permute.xlu0 %1239
  %1241 = vrot.lane.b32.xlu0 %v1156, 126
  %v1242 = vpop.permute.xlu0 %1241
  %1243 = vrot.lane.b32.xlu0 %v1157, 126
  %v1244 = vpop.permute.xlu0 %1243
  %1245 = vrot.lane.b32.xlu0 %v1158, 126
  %v1246 = vpop.permute.xlu0 %1245
  %1247 = vrot.lane.b32.xlu0 %v1159, 126
  %v1248 = vpop.permute.xlu0 %1247
  %v1249 = vsel %vm136, %v1246, %v1248
  %v1250 = vsel %vm136, %v1244, %v1246
  %v1251 = vsel %vm136, %v1242, %v1244
  %v1252 = vsel %vm136, %v1240, %v1242
  %v1253 = vsel %vm136, %v1238, %v1240
  %v1254 = vsel %vm136, %v1236, %v1238
  %v1255 = vsel %vm136, %v1234, %v1236
  %v1256 = vsel %vm136, %v1232, %v1234
  %v1257 = vsel %vm136, %v1230, %v1232
  %v1258 = vsel %vm136, %v1228, %v1230
  %v1259 = vsel %vm136, %v1226, %v1228
  %v1260 = vsel %vm136, %v1248, %v1226
  %1261 = vst [vmem:[#allocation2 + $0xc0] sm:$0xff] %v1259
  %1262 = vst [vmem:[#allocation2 + $0xc8] sm:$0xff] %v1258
  %1263 = vst [vmem:[#allocation2 + $0xd0] sm:$0xff] %v1257
  %1264 = vst [vmem:[#allocation2 + $0xd8] sm:$0xff] %v1256
  %1265 = vst [vmem:[#allocation2 + $0xe0] sm:$0xff] %v1255
  %1266 = vst [vmem:[#allocation2 + $0xe8] sm:$0xff] %v1254
  %1267 = vst [vmem:[#allocation2 + $0xf0] sm:$0xff] %v1253
  %1268 = vst [vmem:[#allocation2 + $0xf8] sm:$0xff] %v1252
  %1269 = vst [vmem:[#allocation2 + $0x100] sm:$0xff] %v1251
  %1270 = vst [vmem:[#allocation2 + $0x108] sm:$0xff] %v1250
  %1271 = vst [vmem:[#allocation2 + $0x110] sm:$0xff] %v1249
  %1272 = vst [vmem:[#allocation2 + $0x118] sm:$0xff] %v1260
  %1273 = vrot.lane.b32.xlu0 %v1148, 112
  %v1274 = vpop.permute.xlu0 %1273
  %1275 = vrot.lane.b32.xlu0 %v1149, 112
  %v1276 = vpop.permute.xlu0 %1275
  %1277 = vrot.lane.b32.xlu0 %v1150, 112
  %v1278 = vpop.permute.xlu0 %1277
  %1279 = vrot.lane.b32.xlu0 %v1151, 112
  %v1280 = vpop.permute.xlu0 %1279
  %1281 = vrot.lane.b32.xlu0 %v1152, 112
  %v1282 = vpop.permute.xlu0 %1281
  %1283 = vrot.lane.b32.xlu0 %v1153, 112
  %v1284 = vpop.permute.xlu0 %1283
  %1285 = vrot.lane.b32.xlu0 %v1154, 112
  %v1286 = vpop.permute.xlu0 %1285
  %1287 = vrot.lane.b32.xlu0 %v1155, 112
  %v1288 = vpop.permute.xlu0 %1287
  %1289 = vrot.lane.b32.xlu0 %v1156, 112
  %v1290 = vpop.permute.xlu0 %1289
  %1291 = vrot.lane.b32.xlu0 %v1157, 112
  %v1292 = vpop.permute.xlu0 %1291
  %1293 = vrot.lane.b32.xlu0 %v1158, 112
  %v1294 = vpop.permute.xlu0 %1293
  %1295 = vrot.lane.b32.xlu0 %v1159, 112
  %v1296 = vpop.permute.xlu0 %1295
  %v1297 = vsel %vm185, %v1294, %v1296
  %v1298 = vsel %vm185, %v1292, %v1294
  %v1299 = vsel %vm185, %v1290, %v1292
  %v1300 = vsel %vm185, %v1288, %v1290
  %v1301 = vsel %vm185, %v1286, %v1288
  %v1302 = vsel %vm185, %v1284, %v1286
  %v1303 = vsel %vm185, %v1282, %v1284
  %v1304 = vsel %vm185, %v1280, %v1282
  %v1305 = vsel %vm185, %v1278, %v1280
  %v1306 = vsel %vm185, %v1276, %v1278
  %v1307 = vsel %vm185, %v1274, %v1276
  %v1308 = vsel %vm185, %v1296, %v1274
  %1309 = vst [vmem:[#allocation2 + $0x120] sm:$0xff] %v1307
  %1310 = vst [vmem:[#allocation2 + $0x128] sm:$0xff] %v1306
  %1311 = vst [vmem:[#allocation2 + $0x130] sm:$0xff] %v1305
  %1312 = vst [vmem:[#allocation2 + $0x138] sm:$0xff] %v1304
  %1313 = vst [vmem:[#allocation2 + $0x140] sm:$0xff] %v1303
  %1314 = vst [vmem:[#allocation2 + $0x148] sm:$0xff] %v1302
  %1315 = vst [vmem:[#allocation2 + $0x150] sm:$0xff] %v1301
  %1316 = vst [vmem:[#allocation2 + $0x158] sm:$0xff] %v1300
  %1317 = vst [vmem:[#allocation2 + $0x160] sm:$0xff] %v1299
  %1318 = vst [vmem:[#allocation2 + $0x168] sm:$0xff] %v1298
  %1319 = vst [vmem:[#allocation2 + $0x170] sm:$0xff] %v1297
  %1320 = vst [vmem:[#allocation2 + $0x178] sm:$0xff] %v1308
  %1321 = vrot.lane.b32.xlu0 %v1148, 111
  %v1322 = vpop.permute.xlu0 %1321
  %1323 = vrot.lane.b32.xlu0 %v1149, 111
  %v1324 = vpop.permute.xlu0 %1323
  %1325 = vrot.lane.b32.xlu0 %v1150, 111
  %v1326 = vpop.permute.xlu0 %1325
  %1327 = vrot.lane.b32.xlu0 %v1151, 111
  %v1328 = vpop.permute.xlu0 %1327
  %1329 = vrot.lane.b32.xlu0 %v1152, 111
  %v1330 = vpop.permute.xlu0 %1329
  %1331 = vrot.lane.b32.xlu0 %v1153, 111
  %v1332 = vpop.permute.xlu0 %1331
  %1333 = vrot.lane.b32.xlu0 %v1154, 111
  %v1334 = vpop.permute.xlu0 %1333
  %1335 = vrot.lane.b32.xlu0 %v1155, 111
  %v1336 = vpop.permute.xlu0 %1335
  %1337 = vrot.lane.b32.xlu0 %v1156, 111
  %v1338 = vpop.permute.xlu0 %1337
  %1339 = vrot.lane.b32.xlu0 %v1157, 111
  %v1340 = vpop.permute.xlu0 %1339
  %1341 = vrot.lane.b32.xlu0 %v1158, 111
  %v1342 = vpop.permute.xlu0 %1341
  %1343 = vrot.lane.b32.xlu0 %v1159, 111
  %v1344 = vpop.permute.xlu0 %1343
  %v1345 = vsel %vm234, %v1342, %v1344
  %v1346 = vsel %vm234, %v1340, %v1342
  %v1347 = vsel %vm234, %v1338, %v1340
  %v1348 = vsel %vm234, %v1336, %v1338
  %v1349 = vsel %vm234, %v1334, %v1336
  %v1350 = vsel %vm234, %v1332, %v1334
  %v1351 = vsel %vm234, %v1330, %v1332
  %v1352 = vsel %vm234, %v1328, %v1330
  %v1353 = vsel %vm234, %v1326, %v1328
  %v1354 = vsel %vm234, %v1324, %v1326
  %v1355 = vsel %vm234, %v1322, %v1324
  %v1356 = vsel %vm234, %v1344, %v1322
  %1357 = vst [vmem:[#allocation2 + $0x180] sm:$0xff] %v1355
  %1358 = vst [vmem:[#allocation2 + $0x188] sm:$0xff] %v1354
  %1359 = vst [vmem:[#allocation2 + $0x190] sm:$0xff] %v1353
  %1360 = vst [vmem:[#allocation2 + $0x198] sm:$0xff] %v1352
  %1361 = vst [vmem:[#allocation2 + $0x1a0] sm:$0xff] %v1351
  %1362 = vst [vmem:[#allocation2 + $0x1a8] sm:$0xff] %v1350
  %1363 = vst [vmem:[#allocation2 + $0x1b0] sm:$0xff] %v1349
  %1364 = vst [vmem:[#allocation2 + $0x1b8] sm:$0xff] %v1348
  %1365 = vst [vmem:[#allocation2 + $0x1c0] sm:$0xff] %v1347
  %1366 = vst [vmem:[#allocation2 + $0x1c8] sm:$0xff] %v1346
  %1367 = vst [vmem:[#allocation2 + $0x1d0] sm:$0xff] %v1345
  %1368 = vst [vmem:[#allocation2 + $0x1d8] sm:$0xff] %v1356
  %1369 = vrot.lane.b32.xlu0 %v1148, 110
  %v1370 = vpop.permute.xlu0 %1369
  %1371 = vrot.lane.b32.xlu0 %v1149, 110
  %v1372 = vpop.permute.xlu0 %1371
  %1373 = vrot.lane.b32.xlu0 %v1150, 110
  %v1374 = vpop.permute.xlu0 %1373
  %1375 = vrot.lane.b32.xlu0 %v1151, 110
  %v1376 = vpop.permute.xlu0 %1375
  %1377 = vrot.lane.b32.xlu0 %v1152, 110
  %v1378 = vpop.permute.xlu0 %1377
  %1379 = vrot.lane.b32.xlu0 %v1153, 110
  %v1380 = vpop.permute.xlu0 %1379
  %1381 = vrot.lane.b32.xlu0 %v1154, 110
  %v1382 = vpop.permute.xlu0 %1381
  %1383 = vrot.lane.b32.xlu0 %v1155, 110
  %v1384 = vpop.permute.xlu0 %1383
  %1385 = vrot.lane.b32.xlu0 %v1156, 110
  %v1386 = vpop.permute.xlu0 %1385
  %1387 = vrot.lane.b32.xlu0 %v1157, 110
  %v1388 = vpop.permute.xlu0 %1387
  %1389 = vrot.lane.b32.xlu0 %v1158, 110
  %v1390 = vpop.permute.xlu0 %1389
  %1391 = vrot.lane.b32.xlu0 %v1159, 110
  %v1392 = vpop.permute.xlu0 %1391
  %v1393 = vsel %vm283, %v1390, %v1392
  %v1394 = vsel %vm283, %v1388, %v1390
  %v1395 = vsel %vm283, %v1386, %v1388
  %v1396 = vsel %vm283, %v1384, %v1386
  %v1397 = vsel %vm283, %v1382, %v1384
  %v1398 = vsel %vm283, %v1380, %v1382
  %v1399 = vsel %vm283, %v1378, %v1380
  %v1400 = vsel %vm283, %v1376, %v1378
  %v1401 = vsel %vm283, %v1374, %v1376
  %v1402 = vsel %vm283, %v1372, %v1374
  %v1403 = vsel %vm283, %v1370, %v1372
  %v1404 = vsel %vm283, %v1392, %v1370
  %1405 = vst [vmem:[#allocation2 + $0x1e0] sm:$0xff] %v1403
  %1406 = vst [vmem:[#allocation2 + $0x1e8] sm:$0xff] %v1402
  %1407 = vst [vmem:[#allocation2 + $0x1f0] sm:$0xff] %v1401
  %1408 = vst [vmem:[#allocation2 + $0x1f8] sm:$0xff] %v1400
  %1409 = vst [vmem:[#allocation2 + $0x200] sm:$0xff] %v1399
  %1410 = vst [vmem:[#allocation2 + $0x208] sm:$0xff] %v1398
  %1411 = vst [vmem:[#allocation2 + $0x210] sm:$0xff] %v1397
  %1412 = vst [vmem:[#allocation2 + $0x218] sm:$0xff] %v1396
  %1413 = vst [vmem:[#allocation2 + $0x220] sm:$0xff] %v1395
  %1414 = vst [vmem:[#allocation2 + $0x228] sm:$0xff] %v1394
  %1415 = vst [vmem:[#allocation2 + $0x230] sm:$0xff] %v1393
  %1416 = vst [vmem:[#allocation2 + $0x238] sm:$0xff] %v1404
  %1417 = vrot.lane.b32.xlu0 %v1148, 96
  %v1418 = vpop.permute.xlu0 %1417
  %1419 = vrot.lane.b32.xlu0 %v1149, 96
  %v1420 = vpop.permute.xlu0 %1419
  %1421 = vrot.lane.b32.xlu0 %v1150, 96
  %v1422 = vpop.permute.xlu0 %1421
  %1423 = vrot.lane.b32.xlu0 %v1151, 96
  %v1424 = vpop.permute.xlu0 %1423
  %1425 = vrot.lane.b32.xlu0 %v1152, 96
  %v1426 = vpop.permute.xlu0 %1425
  %1427 = vrot.lane.b32.xlu0 %v1153, 96
  %v1428 = vpop.permute.xlu0 %1427
  %1429 = vrot.lane.b32.xlu0 %v1154, 96
  %v1430 = vpop.permute.xlu0 %1429
  %1431 = vrot.lane.b32.xlu0 %v1155, 96
  %v1432 = vpop.permute.xlu0 %1431
  %1433 = vrot.lane.b32.xlu0 %v1156, 96
  %v1434 = vpop.permute.xlu0 %1433
  %1435 = vrot.lane.b32.xlu0 %v1157, 96
  %v1436 = vpop.permute.xlu0 %1435
  %1437 = vrot.lane.b32.xlu0 %v1158, 96
  %v1438 = vpop.permute.xlu0 %1437
  %1439 = vrot.lane.b32.xlu0 %v1159, 96
  %v1440 = vpop.permute.xlu0 %1439
  %v1441 = vsel %vm332, %v1438, %v1440
  %v1442 = vsel %vm332, %v1436, %v1438
  %v1443 = vsel %vm332, %v1434, %v1436
  %v1444 = vsel %vm332, %v1432, %v1434
  %v1445 = vsel %vm332, %v1430, %v1432
  %v1446 = vsel %vm332, %v1428, %v1430
  %v1447 = vsel %vm332, %v1426, %v1428
  %v1448 = vsel %vm332, %v1424, %v1426
  %v1449 = vsel %vm332, %v1422, %v1424
  %v1450 = vsel %vm332, %v1420, %v1422
  %v1451 = vsel %vm332, %v1418, %v1420
  %v1452 = vsel %vm332, %v1440, %v1418
  %1453 = vst [vmem:[#allocation2 + $0x240] sm:$0xff] %v1451
  %1454 = vst [vmem:[#allocation2 + $0x248] sm:$0xff] %v1450
  %1455 = vst [vmem:[#allocation2 + $0x250] sm:$0xff] %v1449
  %1456 = vst [vmem:[#allocation2 + $0x258] sm:$0xff] %v1448
  %1457 = vst [vmem:[#allocation2 + $0x260] sm:$0xff] %v1447
  %1458 = vst [vmem:[#allocation2 + $0x268] sm:$0xff] %v1446
  %1459 = vst [vmem:[#allocation2 + $0x270] sm:$0xff] %v1445
  %1460 = vst [vmem:[#allocation2 + $0x278] sm:$0xff] %v1444
  %1461 = vst [vmem:[#allocation2 + $0x280] sm:$0xff] %v1443
  %1462 = vst [vmem:[#allocation2 + $0x288] sm:$0xff] %v1442
  %1463 = vst [vmem:[#allocation2 + $0x290] sm:$0xff] %v1441
  %1464 = vst [vmem:[#allocation2 + $0x298] sm:$0xff] %v1452
  %1465 = vrot.lane.b32.xlu0 %v1148, 95
  %v1466 = vpop.permute.xlu0 %1465
  %1467 = vrot.lane.b32.xlu0 %v1149, 95
  %v1468 = vpop.permute.xlu0 %1467
  %1469 = vrot.lane.b32.xlu0 %v1150, 95
  %v1470 = vpop.permute.xlu0 %1469
  %1471 = vrot.lane.b32.xlu0 %v1151, 95
  %v1472 = vpop.permute.xlu0 %1471
  %1473 = vrot.lane.b32.xlu0 %v1152, 95
  %v1474 = vpop.permute.xlu0 %1473
  %1475 = vrot.lane.b32.xlu0 %v1153, 95
  %v1476 = vpop.permute.xlu0 %1475
  %1477 = vrot.lane.b32.xlu0 %v1154, 95
  %v1478 = vpop.permute.xlu0 %1477
  %1479 = vrot.lane.b32.xlu0 %v1155, 95
  %v1480 = vpop.permute.xlu0 %1479
  %1481 = vrot.lane.b32.xlu0 %v1156, 95
  %v1482 = vpop.permute.xlu0 %1481
  %1483 = vrot.lane.b32.xlu0 %v1157, 95
  %v1484 = vpop.permute.xlu0 %1483
  %1485 = vrot.lane.b32.xlu0 %v1158, 95
  %v1486 = vpop.permute.xlu0 %1485
  %1487 = vrot.lane.b32.xlu0 %v1159, 95
  %v1488 = vpop.permute.xlu0 %1487
  %v1489 = vsel %vm381, %v1486, %v1488
  %v1490 = vsel %vm381, %v1484, %v1486
  %v1491 = vsel %vm381, %v1482, %v1484
  %v1492 = vsel %vm381, %v1480, %v1482
  %v1493 = vsel %vm381, %v1478, %v1480
  %v1494 = vsel %vm381, %v1476, %v1478
  %v1495 = vsel %vm381, %v1474, %v1476
  %v1496 = vsel %vm381, %v1472, %v1474
  %v1497 = vsel %vm381, %v1470, %v1472
  %v1498 = vsel %vm381, %v1468, %v1470
  %v1499 = vsel %vm381, %v1466, %v1468
  %v1500 = vsel %vm381, %v1488, %v1466
  %1501 = vst [vmem:[#allocation2 + $0x2a0] sm:$0xff] %v1499
  %1502 = vst [vmem:[#allocation2 + $0x2a8] sm:$0xff] %v1498
  %1503 = vst [vmem:[#allocation2 + $0x2b0] sm:$0xff] %v1497
  %1504 = vst [vmem:[#allocation2 + $0x2b8] sm:$0xff] %v1496
  %1505 = vst [vmem:[#allocation2 + $0x2c0] sm:$0xff] %v1495
  %1506 = vst [vmem:[#allocation2 + $0x2c8] sm:$0xff] %v1494
  %1507 = vst [vmem:[#allocation2 + $0x2d0] sm:$0xff] %v1493
  %1508 = vst [vmem:[#allocation2 + $0x2d8] sm:$0xff] %v1492
  %1509 = vst [vmem:[#allocation2 + $0x2e0] sm:$0xff] %v1491
  %1510 = vst [vmem:[#allocation2 + $0x2e8] sm:$0xff] %v1490
  %1511 = vst [vmem:[#allocation2 + $0x2f0] sm:$0xff] %v1489
  %1512 = vst [vmem:[#allocation2 + $0x2f8] sm:$0xff] %v1500
  %1513 = vrot.lane.b32.xlu0 %v1148, 94
  %v1514 = vpop.permute.xlu0 %1513
  %1515 = vrot.lane.b32.xlu0 %v1149, 94
  %v1516 = vpop.permute.xlu0 %1515
  %1517 = vrot.lane.b32.xlu0 %v1150, 94
  %v1518 = vpop.permute.xlu0 %1517
  %1519 = vrot.lane.b32.xlu0 %v1151, 94
  %v1520 = vpop.permute.xlu0 %1519
  %1521 = vrot.lane.b32.xlu0 %v1152, 94
  %v1522 = vpop.permute.xlu0 %1521
  %1523 = vrot.lane.b32.xlu0 %v1153, 94
  %v1524 = vpop.permute.xlu0 %1523
  %1525 = vrot.lane.b32.xlu0 %v1154, 94
  %v1526 = vpop.permute.xlu0 %1525
  %1527 = vrot.lane.b32.xlu0 %v1155, 94
  %v1528 = vpop.permute.xlu0 %1527
  %1529 = vrot.lane.b32.xlu0 %v1156, 94
  %v1530 = vpop.permute.xlu0 %1529
  %1531 = vrot.lane.b32.xlu0 %v1157, 94
  %v1532 = vpop.permute.xlu0 %1531
  %1533 = vrot.lane.b32.xlu0 %v1158, 94
  %v1534 = vpop.permute.xlu0 %1533
  %1535 = vrot.lane.b32.xlu0 %v1159, 94
  %v1536 = vpop.permute.xlu0 %1535
  %v1537 = vsel %vm430, %v1534, %v1536
  %v1538 = vsel %vm430, %v1532, %v1534
  %v1539 = vsel %vm430, %v1530, %v1532
  %v1540 = vsel %vm430, %v1528, %v1530
  %v1541 = vsel %vm430, %v1526, %v1528
  %v1542 = vsel %vm430, %v1524, %v1526
  %v1543 = vsel %vm430, %v1522, %v1524
  %v1544 = vsel %vm430, %v1520, %v1522
  %v1545 = vsel %vm430, %v1518, %v1520
  %v1546 = vsel %vm430, %v1516, %v1518
  %v1547 = vsel %vm430, %v1514, %v1516
  %v1548 = vsel %vm430, %v1536, %v1514
  %1549 = vst [vmem:[#allocation2 + $0x300] sm:$0xff] %v1547
  %1550 = vst [vmem:[#allocation2 + $0x308] sm:$0xff] %v1546
  %1551 = vst [vmem:[#allocation2 + $0x310] sm:$0xff] %v1545
  %1552 = vst [vmem:[#allocation2 + $0x318] sm:$0xff] %v1544
  %1553 = vst [vmem:[#allocation2 + $0x320] sm:$0xff] %v1543
  %1554 = vst [vmem:[#allocation2 + $0x328] sm:$0xff] %v1542
  %1555 = vst [vmem:[#allocation2 + $0x330] sm:$0xff] %v1541
  %1556 = vst [vmem:[#allocation2 + $0x338] sm:$0xff] %v1540
  %1557 = vst [vmem:[#allocation2 + $0x340] sm:$0xff] %v1539
  %1558 = vst [vmem:[#allocation2 + $0x348] sm:$0xff] %v1538
  %1559 = vst [vmem:[#allocation2 + $0x350] sm:$0xff] %v1537
  %1560 = vst [vmem:[#allocation2 + $0x358] sm:$0xff] %v1548
  %v1561 = vld [vmem:[#allocation2] sm:$0xff]
  %v1562 = vld [vmem:[#allocation2 + $0x8] sm:$0xff]
  %v1563 = vld [vmem:[#allocation2 + $0x10] sm:$0xff]
  %v1564 = vld [vmem:[#allocation2 + $0x18] sm:$0xff]
  %v1565 = vld [vmem:[#allocation2 + $0x20] sm:$0xff]
  %v1566 = vld [vmem:[#allocation2 + $0x28] sm:$0xff]
  %v1567 = vld [vmem:[#allocation2 + $0x30] sm:$0xff]
  %v1568 = vld [vmem:[#allocation2 + $0x38] sm:$0xff]
  %v1569 = vld [vmem:[#allocation2 + $0x40] sm:$0xff]
  %v1570 = vld [vmem:[#allocation2 + $0x48] sm:$0xff]
  %v1571 = vld [vmem:[#allocation2 + $0x50] sm:$0xff]
  %v1572 = vld [vmem:[#allocation2 + $0x58] sm:$0xff]
  %v1573 = vld [vmem:[#allocation2 + $0x60] sm:$0xff]
  %v1574 = vld [vmem:[#allocation2 + $0x68] sm:$0xff]
  %v1575 = vld [vmem:[#allocation2 + $0x70] sm:$0xff]
  %v1576 = vld [vmem:[#allocation2 + $0x78] sm:$0xff]
  %v1577 = vld [vmem:[#allocation2 + $0x80] sm:$0xff]
  %v1578 = vld [vmem:[#allocation2 + $0x88] sm:$0xff]
  %v1579 = vld [vmem:[#allocation2 + $0x90] sm:$0xff]
  %v1580 = vld [vmem:[#allocation2 + $0x98] sm:$0xff]
  %v1581 = vld [vmem:[#allocation2 + $0xa0] sm:$0xff]
  %v1582 = vld [vmem:[#allocation2 + $0xa8] sm:$0xff]
  %v1583 = vld [vmem:[#allocation2 + $0xb0] sm:$0xff]
  %v1584 = vld [vmem:[#allocation2 + $0xb8] sm:$0xff]
  %v1585 = vld [vmem:[#allocation2 + $0xc0] sm:$0xff]
  %v1586 = vld [vmem:[#allocation2 + $0xc8] sm:$0xff]
  %v1587 = vld [vmem:[#allocation2 + $0xd0] sm:$0xff]
  %v1588 = vld [vmem:[#allocation2 + $0xd8] sm:$0xff]
  %v1589 = vld [vmem:[#allocation2 + $0xe0] sm:$0xff]
  %v1590 = vld [vmem:[#allocation2 + $0xe8] sm:$0xff]
  %v1591 = vld [vmem:[#allocation2 + $0xf0] sm:$0xff]
  %v1592 = vld [vmem:[#allocation2 + $0xf8] sm:$0xff]
  %v1593 = vld [vmem:[#allocation2 + $0x100] sm:$0xff]
  %v1594 = vld [vmem:[#allocation2 + $0x108] sm:$0xff]
  %v1595 = vld [vmem:[#allocation2 + $0x110] sm:$0xff]
  %v1596 = vld [vmem:[#allocation2 + $0x118] sm:$0xff]
  %v1597 = vld [vmem:[#allocation2 + $0x120] sm:$0xff]
  %v1598 = vld [vmem:[#allocation2 + $0x128] sm:$0xff]
  %v1599 = vld [vmem:[#allocation2 + $0x130] sm:$0xff]
  %v1600 = vld [vmem:[#allocation2 + $0x138] sm:$0xff]
  %v1601 = vld [vmem:[#allocation2 + $0x140] sm:$0xff]
  %v1602 = vld [vmem:[#allocation2 + $0x148] sm:$0xff]
  %v1603 = vld [vmem:[#allocation2 + $0x150] sm:$0xff]
  %v1604 = vld [vmem:[#allocation2 + $0x158] sm:$0xff]
  %v1605 = vld [vmem:[#allocation2 + $0x160] sm:$0xff]
  %v1606 = vld [vmem:[#allocation2 + $0x168] sm:$0xff]
  %v1607 = vld [vmem:[#allocation2 + $0x170] sm:$0xff]
  %v1608 = vld [vmem:[#allocation2 + $0x178] sm:$0xff]
  %v1609 = vld [vmem:[#allocation2 + $0x180] sm:$0xff]
  %v1610 = vld [vmem:[#allocation2 + $0x188] sm:$0xff]
  %v1611 = vld [vmem:[#allocation2 + $0x190] sm:$0xff]
  %v1612 = vld [vmem:[#allocation2 + $0x198] sm:$0xff]
  %v1613 = vld [vmem:[#allocation2 + $0x1a0] sm:$0xff]
  %v1614 = vld [vmem:[#allocation2 + $0x1a8] sm:$0xff]
  %v1615 = vld [vmem:[#allocation2 + $0x1b0] sm:$0xff]
  %v1616 = vld [vmem:[#allocation2 + $0x1b8] sm:$0xff]
  %v1617 = vld [vmem:[#allocation2 + $0x1c0] sm:$0xff]
  %v1618 = vld [vmem:[#allocation2 + $0x1c8] sm:$0xff]
  %v1619 = vld [vmem:[#allocation2 + $0x1d0] sm:$0xff]
  %v1620 = vld [vmem:[#allocation2 + $0x1d8] sm:$0xff]
  %v1621 = vld [vmem:[#allocation2 + $0x1e0] sm:$0xff]
  %v1622 = vld [vmem:[#allocation2 + $0x1e8] sm:$0xff]
  %v1623 = vld [vmem:[#allocation2 + $0x1f0] sm:$0xff]
  %v1624 = vld [vmem:[#allocation2 + $0x1f8] sm:$0xff]
  %v1625 = vld [vmem:[#allocation2 + $0x200] sm:$0xff]
  %v1626 = vld [vmem:[#allocation2 + $0x208] sm:$0xff]
  %v1627 = vld [vmem:[#allocation2 + $0x210] sm:$0xff]
  %v1628 = vld [vmem:[#allocation2 + $0x218] sm:$0xff]
  %v1629 = vld [vmem:[#allocation2 + $0x220] sm:$0xff]
  %v1630 = vld [vmem:[#allocation2 + $0x228] sm:$0xff]
  %v1631 = vld [vmem:[#allocation2 + $0x230] sm:$0xff]
  %v1632 = vld [vmem:[#allocation2 + $0x238] sm:$0xff]
  %v1633 = vld [vmem:[#allocation2 + $0x240] sm:$0xff]
  %v1634 = vld [vmem:[#allocation2 + $0x248] sm:$0xff]
  %v1635 = vld [vmem:[#allocation2 + $0x250] sm:$0xff]
  %v1636 = vld [vmem:[#allocation2 + $0x258] sm:$0xff]
  %v1637 = vld [vmem:[#allocation2 + $0x260] sm:$0xff]
  %v1638 = vld [vmem:[#allocation2 + $0x268] sm:$0xff]
  %v1639 = vld [vmem:[#allocation2 + $0x270] sm:$0xff]
  %v1640 = vld [vmem:[#allocation2 + $0x278] sm:$0xff]
  %v1641 = vld [vmem:[#allocation2 + $0x280] sm:$0xff]
  %v1642 = vld [vmem:[#allocation2 + $0x288] sm:$0xff]
  %v1643 = vld [vmem:[#allocation2 + $0x290] sm:$0xff]
  %v1644 = vld [vmem:[#allocation2 + $0x298] sm:$0xff]
  %v1645 = vld [vmem:[#allocation2 + $0x2a0] sm:$0xff]
  %v1646 = vld [vmem:[#allocation2 + $0x2a8] sm:$0xff]
  %v1647 = vld [vmem:[#allocation2 + $0x2b0] sm:$0xff]
  %v1648 = vld [vmem:[#allocation2 + $0x2b8] sm:$0xff]
  %v1649 = vld [vmem:[#allocation2 + $0x2c0] sm:$0xff]
  %v1650 = vld [vmem:[#allocation2 + $0x2c8] sm:$0xff]
  %v1651 = vld [vmem:[#allocation2 + $0x2d0] sm:$0xff]
  %v1652 = vld [vmem:[#allocation2 + $0x2d8] sm:$0xff]
  %v1653 = vld [vmem:[#allocation2 + $0x2e0] sm:$0xff]
  %v1654 = vld [vmem:[#allocation2 + $0x2e8] sm:$0xff]
  %v1655 = vld [vmem:[#allocation2 + $0x2f0] sm:$0xff]
  %v1656 = vld [vmem:[#allocation2 + $0x2f8] sm:$0xff]
  %v1657 = vld [vmem:[#allocation2 + $0x300] sm:$0xff]
  %v1658 = vld [vmem:[#allocation2 + $0x308] sm:$0xff]
  %v1659 = vld [vmem:[#allocation2 + $0x310] sm:$0xff]
  %v1660 = vld [vmem:[#allocation2 + $0x318] sm:$0xff]
  %v1661 = vld [vmem:[#allocation2 + $0x320] sm:$0xff]
  %v1662 = vld [vmem:[#allocation2 + $0x328] sm:$0xff]
  %v1663 = vld [vmem:[#allocation2 + $0x330] sm:$0xff]
  %v1664 = vld [vmem:[#allocation2 + $0x338] sm:$0xff]
  %v1665 = vld [vmem:[#allocation2 + $0x340] sm:$0xff]
  %v1666 = vld [vmem:[#allocation2 + $0x348] sm:$0xff]
  %v1667 = vld [vmem:[#allocation2 + $0x350] sm:$0xff]
  %v1668 = vld [vmem:[#allocation2 + $0x358] sm:$0xff]
  %v1670 = vsel %vm563, %v1160, 0
  %1672 = vmatprep.subr.mxu0 %v1562
  %1673 = vmatpush1.msra.mxu0 %v1561
  %1674 = vmatprep.subr.mxu0 %v1574
  %1675 = vmatpush1.msra.mxu0 %v1573
  %1676 = vmatprep.subr.mxu0 %v1586
  %1677 = vmatpush1.msra.mxu0 %v1585
  %1678 = vmatprep.subr.mxu0 %v1598
  %1679 = vmatpush1.msra.mxu0 %v1597
  %1680 = vmatprep.subr.mxu0 %v1610
  %1681 = vmatpush1.msra.mxu0 %v1609
  %1682 = vmatprep.subr.mxu0 %v1622
  %1683 = vmatpush1.msra.mxu0 %v1621
  %1684 = vmatprep.subr.mxu0 %v1634
  %1685 = vmatpush1.msra.mxu0 %v1633
  %1686 = vmatprep.subr.mxu0 %v1646
  %1687 = vmatpush1.msra.mxu0 %v1645
  %1688 = vmatprep.subr.mxu0 %v1658
  %1689 = vmatpush1.msra.mxu0 %v1657
  %1690 = vmatprep.subr.mxu0 0.0
  %1691 = vmatpush1.msra.mxu0 0.0
  %1692 = vmatprep.subr.mxu0 0.0
  %1693 = vmatpush1.msra.mxu0 0.0
  %1694 = vmatprep.subr.mxu0 0.0
  %1695 = vmatpush1.msra.mxu0 0.0
  %1696 = vmatprep.subr.mxu0 0.0
  %1697 = vmatpush1.msra.mxu0 0.0
  %1698 = vmatprep.subr.mxu0 0.0
  %1699 = vmatpush1.msra.mxu0 0.0
  %1700 = vmatprep.subr.mxu0 0.0
  %1701 = vmatpush1.msra.mxu0 0.0
  %1702 = vmatprep.subr.mxu0 0.0
  %1703 = vmatpush1.msra.mxu0 0.0
  %1704 = vmatprep.subr.mxu0 0.0
  %1705 = vmatpush1.msra.mxu0 0.0
  %1706 = vmatprep.subr.mxu0 0.0
  %1707 = vmatpush1.msra.mxu0 0.0
  %1708 = vmatprep.subr.mxu0 0.0
  %1709 = vmatpush1.msra.mxu0 0.0
  %1710 = vmatprep.subr.mxu0 0.0
  %1711 = vmatpush1.msra.mxu0 0.0
  %1712 = vmatprep.subr.mxu0 0.0
  %1713 = vmatpush1.msra.mxu0 0.0
  %1714 = vmatprep.subr.mxu0 0.0
  %1715 = vmatpush1.msra.mxu0 0.0
  %1716 = vmatprep.subr.mxu0 0.0
  %1717 = vmatpush1.msra.mxu0 0.0
  %1718 = vmatprep.subr.mxu0 0.0
  %1719 = vmatpush1.msra.mxu0 0.0
  %1720 = vmatprep.subr.mxu0 0.0
  %1721 = vmatpush1.msra.mxu0 0.0
  %1722 = vmatprep.subr.mxu0 0.0
  %1723 = vmatpush1.msra.mxu0 0.0
  %1724 = vmatprep.subr.mxu0 0.0
  %1725 = vmatpush1.msra.mxu0 0.0
  %1726 = vmatprep.subr.mxu0 0.0
  %1727 = vmatpush1.msra.mxu0 0.0
  %1728 = vmatprep.subr.mxu0 0.0
  %1729 = vmatpush1.msra.mxu0 0.0
  %1730 = vmatprep.subr.mxu0 0.0
  %1731 = vmatpush1.msra.mxu0 0.0
  %1732 = vmatprep.subr.mxu0 0.0
  %1733 = vmatpush1.msra.mxu0 0.0
  %1734 = vmatprep.subr.mxu0 0.0
  %1735 = vmatpush1.msra.mxu0 0.0
  %1736 = vmatprep.mubr.f32.mxu0 0.0
  %1737 = vmatmul.mubr.f32.gmra.mrb[0].mxu0 %v1670
  %v1738 = vpop.f32.mrb[0].mxu0
  %v1739 = vadd.f32 0.0, %v1738
  %v1740 = vpop.f32.mrb[0].mxu0
  %v1741 = vadd.f32 0.0, %v1740
  %1742 = vdwg.mxu0
  %1743 = vmatprep.subr.mxu0 %v1564
  %1744 = vmatpush1.msra.mxu0 %v1563
  %1745 = vmatprep.subr.mxu0 %v1576
  %1746 = vmatpush1.msra.mxu0 %v1575
  %1747 = vmatprep.subr.mxu0 %v1588
  %1748 = vmatpush1.msra.mxu0 %v1587
  %1749 = vmatprep.subr.mxu0 %v1600
  %1750 = vmatpush1.msra.mxu0 %v1599
  %1751 = vmatprep.subr.mxu0 %v1612
  %1752 = vmatpush1.msra.mxu0 %v1611
  %1753 = vmatprep.subr.mxu0 %v1624
  %1754 = vmatpush1.msra.mxu0 %v1623
  %1755 = vmatprep.subr.mxu0 %v1636
  %1756 = vmatpush1.msra.mxu0 %v1635
  %1757 = vmatprep.subr.mxu0 %v1648
  %1758 = vmatpush1.msra.mxu0 %v1647
  %1759 = vmatprep.subr.mxu0 %v1660
  %1760 = vmatpush1.msra.mxu0 %v1659
  %1761 = vmatprep.subr.mxu0 0.0
  %1762 = vmatpush1.msra.mxu0 0.0
  %1763 = vmatprep.subr.mxu0 0.0
  %1764 = vmatpush1.msra.mxu0 0.0
  %1765 = vmatprep.subr.mxu0 0.0
  %1766 = vmatpush1.msra.mxu0 0.0
  %1767 = vmatprep.subr.mxu0 0.0
  %1768 = vmatpush1.msra.mxu0 0.0
  %1769 = vmatprep.subr.mxu0 0.0
  %1770 = vmatpush1.msra.mxu0 0.0
  %1771 = vmatprep.subr.mxu0 0.0
  %1772 = vmatpush1.msra.mxu0 0.0
  %1773 = vmatprep.subr.mxu0 0.0
  %1774 = vmatpush1.msra.mxu0 0.0
  %1775 = vmatprep.subr.mxu0 0.0
  %1776 = vmatpush1.msra.mxu0 0.0
  %1777 = vmatprep.subr.mxu0 0.0
  %1778 = vmatpush1.msra.mxu0 0.0
  %1779 = vmatprep.subr.mxu0 0.0
  %1780 = vmatpush1.msra.mxu0 0.0
  %1781 = vmatprep.subr.mxu0 0.0
  %1782 = vmatpush1.msra.mxu0 0.0
  %1783 = vmatprep.subr.mxu0 0.0
  %1784 = vmatpush1.msra.mxu0 0.0
  %1785 = vmatprep.subr.mxu0 0.0
  %1786 = vmatpush1.msra.mxu0 0.0
  %1787 = vmatprep.subr.mxu0 0.0
  %1788 = vmatpush1.msra.mxu0 0.0
  %1789 = vmatprep.subr.mxu0 0.0
  %1790 = vmatpush1.msra.mxu0 0.0
  %1791 = vmatprep.subr.mxu0 0.0
  %1792 = vmatpush1.msra.mxu0 0.0
  %1793 = vmatprep.subr.mxu0 0.0
  %1794 = vmatpush1.msra.mxu0 0.0
  %1795 = vmatprep.subr.mxu0 0.0
  %1796 = vmatpush1.msra.mxu0 0.0
  %1797 = vmatprep.subr.mxu0 0.0
  %1798 = vmatpush1.msra.mxu0 0.0
  %1799 = vmatprep.subr.mxu0 0.0
  %1800 = vmatpush1.msra.mxu0 0.0
  %1801 = vmatprep.subr.mxu0 0.0
  %1802 = vmatpush1.msra.mxu0 0.0
  %1803 = vmatprep.subr.mxu0 0.0
  %1804 = vmatpush1.msra.mxu0 0.0
  %1805 = vmatprep.subr.mxu0 0.0
  %1806 = vmatpush1.msra.mxu0 0.0
  %1807 = vmatprep.mubr.f32.mxu0 0.0
  %1808 = vmatmul.mubr.f32.gmra.mrb[0].mxu0 %v1670
  %v1809 = vpop.f32.mrb[0].mxu0
  %v1810 = vadd.f32 0.0, %v1809
  %v1811 = vpop.f32.mrb[0].mxu0
  %v1812 = vadd.f32 0.0, %v1811
  %1813 = vdwg.mxu0
  %1814 = vmatprep.subr.mxu0 %v1566
  %1815 = vmatpush1.msra.mxu0 %v1565
  %1816 = vmatprep.subr.mxu0 %v1578
  %1817 = vmatpush1.msra.mxu0 %v1577
  %1818 = vmatprep.subr.mxu0 %v1590
  %1819 = vmatpush1.msra.mxu0 %v1589
  %1820 = vmatprep.subr.mxu0 %v1602
  %1821 = vmatpush1.msra.mxu0 %v1601
  %1822 = vmatprep.subr.mxu0 %v1614
  %1823 = vmatpush1.msra.mxu0 %v1613
  %1824 = vmatprep.subr.mxu0 %v1626
  %1825 = vmatpush1.msra.mxu0 %v1625
  %1826 = vmatprep.subr.mxu0 %v1638
  %1827 = vmatpush1.msra.mxu0 %v1637
  %1828 = vmatprep.subr.mxu0 %v1650
  %1829 = vmatpush1.msra.mxu0 %v1649
  %1830 = vmatprep.subr.mxu0 %v1662
  %1831 = vmatpush1.msra.mxu0 %v1661
  %1832 = vmatprep.subr.mxu0 0.0
  %1833 = vmatpush1.msra.mxu0 0.0
  %1834 = vmatprep.subr.mxu0 0.0
  %1835 = vmatpush1.msra.mxu0 0.0
  %1836 = vmatprep.subr.mxu0 0.0
  %1837 = vmatpush1.msra.mxu0 0.0
  %1838 = vmatprep.subr.mxu0 0.0
  %1839 = vmatpush1.msra.mxu0 0.0
  %1840 = vmatprep.subr.mxu0 0.0
  %1841 = vmatpush1.msra.mxu0 0.0
  %1842 = vmatprep.subr.mxu0 0.0
  %1843 = vmatpush1.msra.mxu0 0.0
  %1844 = vmatprep.subr.mxu0 0.0
  %1845 = vmatpush1.msra.mxu0 0.0
  %1846 = vmatprep.subr.mxu0 0.0
  %1847 = vmatpush1.msra.mxu0 0.0
  %1848 = vmatprep.subr.mxu0 0.0
  %1849 = vmatpush1.msra.mxu0 0.0
  %1850 = vmatprep.subr.mxu0 0.0
  %1851 = vmatpush1.msra.mxu0 0.0
  %1852 = vmatprep.subr.mxu0 0.0
  %1853 = vmatpush1.msra.mxu0 0.0
  %1854 = vmatprep.subr.mxu0 0.0
  %1855 = vmatpush1.msra.mxu0 0.0
  %1856 = vmatprep.subr.mxu0 0.0
  %1857 = vmatpush1.msra.mxu0 0.0
  %1858 = vmatprep.subr.mxu0 0.0
  %1859 = vmatpush1.msra.mxu0 0.0
  %1860 = vmatprep.subr.mxu0 0.0
  %1861 = vmatpush1.msra.mxu0 0.0
  %1862 = vmatprep.subr.mxu0 0.0
  %1863 = vmatpush1.msra.mxu0 0.0
  %1864 = vmatprep.subr.mxu0 0.0
  %1865 = vmatpush1.msra.mxu0 0.0
  %1866 = vmatprep.subr.mxu0 0.0
  %1867 = vmatpush1.msra.mxu0 0.0
  %1868 = vmatprep.subr.mxu0 0.0
  %1869 = vmatpush1.msra.mxu0 0.0
  %1870 = vmatprep.subr.mxu0 0.0
  %1871 = vmatpush1.msra.mxu0 0.0
  %1872 = vmatprep.subr.mxu0 0.0
  %1873 = vmatpush1.msra.mxu0 0.0
  %1874 = vmatprep.subr.mxu0 0.0
  %1875 = vmatpush1.msra.mxu0 0.0
  %1876 = vmatprep.subr.mxu0 0.0
  %1877 = vmatpush1.msra.mxu0 0.0
  %1878 = vmatprep.mubr.f32.mxu0 0.0
  %1879 = vmatmul.mubr.f32.gmra.mrb[0].mxu0 %v1670
  %v1880 = vpop.f32.mrb[0].mxu0
  %v1881 = vadd.f32 0.0, %v1880
  %v1882 = vpop.f32.mrb[0].mxu0
  %v1883 = vadd.f32 0.0, %v1882
  %1884 = vdwg.mxu0
  %1885 = vmatprep.subr.mxu0 %v1568
  %1886 = vmatpush1.msra.mxu0 %v1567
  %1887 = vmatprep.subr.mxu0 %v1580
  %1888 = vmatpush1.msra.mxu0 %v1579
  %1889 = vmatprep.subr.mxu0 %v1592
  %1890 = vmatpush1.msra.mxu0 %v1591
  %1891 = vmatprep.subr.mxu0 %v1604
  %1892 = vmatpush1.msra.mxu0 %v1603
  %1893 = vmatprep.subr.mxu0 %v1616
  %1894 = vmatpush1.msra.mxu0 %v1615
  %1895 = vmatprep.subr.mxu0 %v1628
  %1896 = vmatpush1.msra.mxu0 %v1627
  %1897 = vmatprep.subr.mxu0 %v1640
  %1898 = vmatpush1.msra.mxu0 %v1639
  %1899 = vmatprep.subr.mxu0 %v1652
  %1900 = vmatpush1.msra.mxu0 %v1651
  %1901 = vmatprep.subr.mxu0 %v1664
  %1902 = vmatpush1.msra.mxu0 %v1663
  %1903 = vmatprep.subr.mxu0 0.0
  %1904 = vmatpush1.msra.mxu0 0.0
  %1905 = vmatprep.subr.mxu0 0.0
  %1906 = vmatpush1.msra.mxu0 0.0
  %1907 = vmatprep.subr.mxu0 0.0
  %1908 = vmatpush1.msra.mxu0 0.0
  %1909 = vmatprep.subr.mxu0 0.0
  %1910 = vmatpush1.msra.mxu0 0.0
  %1911 = vmatprep.subr.mxu0 0.0
  %1912 = vmatpush1.msra.mxu0 0.0
  %1913 = vmatprep.subr.mxu0 0.0
  %1914 = vmatpush1.msra.mxu0 0.0
  %1915 = vmatprep.subr.mxu0 0.0
  %1916 = vmatpush1.msra.mxu0 0.0
  %1917 = vmatprep.subr.mxu0 0.0
  %1918 = vmatpush1.msra.mxu0 0.0
  %1919 = vmatprep.subr.mxu0 0.0
  %1920 = vmatpush1.msra.mxu0 0.0
  %1921 = vmatprep.subr.mxu0 0.0
  %1922 = vmatpush1.msra.mxu0 0.0
  %1923 = vmatprep.subr.mxu0 0.0
  %1924 = vmatpush1.msra.mxu0 0.0
  %1925 = vmatprep.subr.mxu0 0.0
  %1926 = vmatpush1.msra.mxu0 0.0
  %1927 = vmatprep.subr.mxu0 0.0
  %1928 = vmatpush1.msra.mxu0 0.0
  %1929 = vmatprep.subr.mxu0 0.0
  %1930 = vmatpush1.msra.mxu0 0.0
  %1931 = vmatprep.subr.mxu0 0.0
  %1932 = vmatpush1.msra.mxu0 0.0
  %1933 = vmatprep.subr.mxu0 0.0
  %1934 = vmatpush1.msra.mxu0 0.0
  %1935 = vmatprep.subr.mxu0 0.0
  %1936 = vmatpush1.msra.mxu0 0.0
  %1937 = vmatprep.subr.mxu0 0.0
  %1938 = vmatpush1.msra.mxu0 0.0
  %1939 = vmatprep.subr.mxu0 0.0
  %1940 = vmatpush1.msra.mxu0 0.0
  %1941 = vmatprep.subr.mxu0 0.0
  %1942 = vmatpush1.msra.mxu0 0.0
  %1943 = vmatprep.subr.mxu0 0.0
  %1944 = vmatpush1.msra.mxu0 0.0
  %1945 = vmatprep.subr.mxu0 0.0
  %1946 = vmatpush1.msra.mxu0 0.0
  %1947 = vmatprep.subr.mxu0 0.0
  %1948 = vmatpush1.msra.mxu0 0.0
  %1949 = vmatprep.mubr.f32.mxu0 0.0
  %1950 = vmatmul.mubr.f32.gmra.mrb[0].mxu0 %v1670
  %v1951 = vpop.f32.mrb[0].mxu0
  %v1952 = vadd.f32 0.0, %v1951
  %v1953 = vpop.f32.mrb[0].mxu0
  %v1954 = vadd.f32 0.0, %v1953
  %1955 = vdwg.mxu0
  %1956 = vmatprep.subr.mxu0 %v1570
  %1957 = vmatpush1.msra.mxu0 %v1569
  %1958 = vmatprep.subr.mxu0 %v1582
  %1959 = vmatpush1.msra.mxu0 %v1581
  %1960 = vmatprep.subr.mxu0 %v1594
  %1961 = vmatpush1.msra.mxu0 %v1593
  %1962 = vmatprep.subr.mxu0 %v1606
  %1963 = vmatpush1.msra.mxu0 %v1605
  %1964 = vmatprep.subr.mxu0 %v1618
  %1965 = vmatpush1.msra.mxu0 %v1617
  %1966 = vmatprep.subr.mxu0 %v1630
  %1967 = vmatpush1.msra.mxu0 %v1629
  %1968 = vmatprep.subr.mxu0 %v1642
  %1969 = vmatpush1.msra.mxu0 %v1641
  %1970 = vmatprep.subr.mxu0 %v1654
  %1971 = vmatpush1.msra.mxu0 %v1653
  %1972 = vmatprep.subr.mxu0 %v1666
  %1973 = vmatpush1.msra.mxu0 %v1665
  %1974 = vmatprep.subr.mxu0 0.0
  %1975 = vmatpush1.msra.mxu0 0.0
  %1976 = vmatprep.subr.mxu0 0.0
  %1977 = vmatpush1.msra.mxu0 0.0
  %1978 = vmatprep.subr.mxu0 0.0
  %1979 = vmatpush1.msra.mxu0 0.0
  %1980 = vmatprep.subr.mxu0 0.0
  %1981 = vmatpush1.msra.mxu0 0.0
  %1982 = vmatprep.subr.mxu0 0.0
  %1983 = vmatpush1.msra.mxu0 0.0
  %1984 = vmatprep.subr.mxu0 0.0
  %1985 = vmatpush1.msra.mxu0 0.0
  %1986 = vmatprep.subr.mxu0 0.0
  %1987 = vmatpush1.msra.mxu0 0.0
  %1988 = vmatprep.subr.mxu0 0.0
  %1989 = vmatpush1.msra.mxu0 0.0
  %1990 = vmatprep.subr.mxu0 0.0
  %1991 = vmatpush1.msra.mxu0 0.0
  %1992 = vmatprep.subr.mxu0 0.0
  %1993 = vmatpush1.msra.mxu0 0.0
  %1994 = vmatprep.subr.mxu0 0.0
  %1995 = vmatpush1.msra.mxu0 0.0
  %1996 = vmatprep.subr.mxu0 0.0
  %1997 = vmatpush1.msra.mxu0 0.0
  %1998 = vmatprep.subr.mxu0 0.0
  %1999 = vmatpush1.msra.mxu0 0.0
  %2000 = vmatprep.subr.mxu0 0.0
  %2001 = vmatpush1.msra.mxu0 0.0
  %2002 = vmatprep.subr.mxu0 0.0
  %2003 = vmatpush1.msra.mxu0 0.0
  %2004 = vmatprep.subr.mxu0 0.0
  %2005 = vmatpush1.msra.mxu0 0.0
  %2006 = vmatprep.subr.mxu0 0.0
  %2007 = vmatpush1.msra.mxu0 0.0
  %2008 = vmatprep.subr.mxu0 0.0
  %2009 = vmatpush1.msra.mxu0 0.0
  %2010 = vmatprep.subr.mxu0 0.0
  %2011 = vmatpush1.msra.mxu0 0.0
  %2012 = vmatprep.subr.mxu0 0.0
  %2013 = vmatpush1.msra.mxu0 0.0
  %2014 = vmatprep.subr.mxu0 0.0
  %2015 = vmatpush1.msra.mxu0 0.0
  %2016 = vmatprep.subr.mxu0 0.0
  %2017 = vmatpush1.msra.mxu0 0.0
  %2018 = vmatprep.subr.mxu0 0.0
  %2019 = vmatpush1.msra.mxu0 0.0
  %2020 = vmatprep.mubr.f32.mxu0 0.0
  %2021 = vmatmul.mubr.f32.gmra.mrb[0].mxu0 %v1670
  %v2022 = vpop.f32.mrb[0].mxu0
  %v2023 = vadd.f32 0.0, %v2022
  %v2024 = vpop.f32.mrb[0].mxu0
  %v2025 = vadd.f32 0.0, %v2024
  %2026 = vdwg.mxu0
  %2027 = vmatprep.subr.mxu0 %v1572
  %2028 = vmatpush1.msra.mxu0 %v1571
  %2029 = vmatprep.subr.mxu0 %v1584
  %2030 = vmatpush1.msra.mxu0 %v1583
  %2031 = vmatprep.subr.mxu0 %v1596
  %2032 = vmatpush1.msra.mxu0 %v1595
  %2033 = vmatprep.subr.mxu0 %v1608
  %2034 = vmatpush1.msra.mxu0 %v1607
  %2035 = vmatprep.subr.mxu0 %v1620
  %2036 = vmatpush1.msra.mxu0 %v1619
  %2037 = vmatprep.subr.mxu0 %v1632
  %2038 = vmatpush1.msra.mxu0 %v1631
  %2039 = vmatprep.subr.mxu0 %v1644
  %2040 = vmatpush1.msra.mxu0 %v1643
  %2041 = vmatprep.subr.mxu0 %v1656
  %2042 = vmatpush1.msra.mxu0 %v1655
  %2043 = vmatprep.subr.mxu0 %v1668
  %2044 = vmatpush1.msra.mxu0 %v1667
  %2045 = vmatprep.subr.mxu0 0.0
  %2046 = vmatpush1.msra.mxu0 0.0
  %2047 = vmatprep.subr.mxu0 0.0
  %2048 = vmatpush1.msra.mxu0 0.0
  %2049 = vmatprep.subr.mxu0 0.0
  %2050 = vmatpush1.msra.mxu0 0.0
  %2051 = vmatprep.subr.mxu0 0.0
  %2052 = vmatpush1.msra.mxu0 0.0
  %2053 = vmatprep.subr.mxu0 0.0
  %2054 = vmatpush1.msra.mxu0 0.0
  %2055 = vmatprep.subr.mxu0 0.0
  %2056 = vmatpush1.msra.mxu0 0.0
  %2057 = vmatprep.subr.mxu0 0.0
  %2058 = vmatpush1.msra.mxu0 0.0
  %2059 = vmatprep.subr.mxu0 0.0
  %2060 = vmatpush1.msra.mxu0 0.0
  %2061 = vmatprep.subr.mxu0 0.0
  %2062 = vmatpush1.msra.mxu0 0.0
  %2063 = vmatprep.subr.mxu0 0.0
  %2064 = vmatpush1.msra.mxu0 0.0
  %2065 = vmatprep.subr.mxu0 0.0
  %2066 = vmatpush1.msra.mxu0 0.0
  %2067 = vmatprep.subr.mxu0 0.0
  %2068 = vmatpush1.msra.mxu0 0.0
  %2069 = vmatprep.subr.mxu0 0.0
  %2070 = vmatpush1.msra.mxu0 0.0
  %2071 = vmatprep.subr.mxu0 0.0
  %2072 = vmatpush1.msra.mxu0 0.0
  %2073 = vmatprep.subr.mxu0 0.0
  %2074 = vmatpush1.msra.mxu0 0.0
  %2075 = vmatprep.subr.mxu0 0.0
  %2076 = vmatpush1.msra.mxu0 0.0
  %2077 = vmatprep.subr.mxu0 0.0
  %2078 = vmatpush1.msra.mxu0 0.0
  %2079 = vmatprep.subr.mxu0 0.0
  %2080 = vmatpush1.msra.mxu0 0.0
  %2081 = vmatprep.subr.mxu0 0.0
  %2082 = vmatpush1.msra.mxu0 0.0
  %2083 = vmatprep.subr.mxu0 0.0
  %2084 = vmatpush1.msra.mxu0 0.0
  %2085 = vmatprep.subr.mxu0 0.0
  %2086 = vmatpush1.msra.mxu0 0.0
  %2087 = vmatprep.subr.mxu0 0.0
  %2088 = vmatpush1.msra.mxu0 0.0
  %2089 = vmatprep.subr.mxu0 0.0
  %2090 = vmatpush1.msra.mxu0 0.0
  %2091 = vmatprep.mubr.f32.mxu0 0.0
  %2092 = vmatmul.mubr.f32.gmra.mrb[0].mxu0 %v1670
  %v2093 = vpop.f32.mrb[0].mxu0
  %v2094 = vadd.f32 0.0, %v2093
  %v2095 = vpop.f32.mrb[0].mxu0
  %v2096 = vadd.f32 0.0, %v2095
  %2097 = vdwg.mxu0
  %v2100 = vlaneseq
  %v2101 = vshrl.u32 %v2100, 7
  %v2102 = vsub.s32 0, %v2101
  %v2103 = vrot.slane %v1163, %v2102
  %v2104 = vlaneseq
  %v2105 = vshrl.u32 %v2104, 7
  %v2106 = vsub.s32 1, %v2105
  %v2107 = vrot.slane %v1163, %v2106
  %v2108 = vlaneseq
  %v2109 = vshrl.u32 %v2108, 7
  %v2110 = vsub.s32 2, %v2109
  %v2111 = vrot.slane %v1163, %v2110
  %v2112 = vlaneseq
  %v2113 = vshrl.u32 %v2112, 7
  %v2114 = vsub.s32 3, %v2113
  %v2115 = vrot.slane %v1163, %v2114
  %v2116 = vlaneseq
  %v2117 = vshrl.u32 %v2116, 7
  %v2118 = vsub.s32 4, %v2117
  %v2119 = vrot.slane %v1163, %v2118
  %v2120 = vlaneseq
  %v2121 = vshrl.u32 %v2120, 7
  %v2122 = vsub.s32 5, %v2121
  %v2123 = vrot.slane %v1163, %v2122
  %v2124 = vlaneseq
  %v2125 = vshrl.u32 %v2124, 7
  %v2126 = vsub.s32 6, %v2125
  %v2127 = vrot.slane %v1163, %v2126
  %v2128 = vlaneseq
  %v2129 = vshrl.u32 %v2128, 7
  %v2130 = vsub.s32 7, %v2129
  %v2131 = vrot.slane %v1163, %v2130
  %v2132 = vlaneseq
  %v2133 = vshrl.u32 %v2132, 7
  %v2134 = vsub.s32 0, %v2133
  %v2135 = vrot.slane %v1164, %v2134
  %v2136 = vlaneseq
  %v2137 = vshrl.u32 %v2136, 7
  %v2138 = vsub.s32 1, %v2137
  %v2139 = vrot.slane %v1164, %v2138
  %v2140 = vlaneseq
  %v2141 = vshrl.u32 %v2140, 7
  %v2142 = vsub.s32 2, %v2141
  %v2143 = vrot.slane %v1164, %v2142
  %v2144 = vlaneseq
  %v2145 = vshrl.u32 %v2144, 7
  %v2146 = vsub.s32 3, %v2145
  %v2147 = vrot.slane %v1164, %v2146
  %v2160 = vmul.f32 %v1739, %v2103
  %v2161 = vmul.f32 %v1741, %v2107
  %v2162 = vmul.f32 %v1810, %v2111
  %v2163 = vmul.f32 %v1812, %v2115
  %v2164 = vmul.f32 %v1881, %v2119
  %v2165 = vmul.f32 %v1883, %v2123
  %v2166 = vmul.f32 %v1952, %v2127
  %v2167 = vmul.f32 %v1954, %v2131
  %v2168 = vmul.f32 %v2023, %v2135
  %v2169 = vmul.f32 %v2025, %v2139
  %v2170 = vmul.f32 %v2094, %v2143
  %v2171 = vmul.f32 %v2096, %v2147
  %v2172 = vadd.f32 %v2160, %v2161
  %v2173 = vadd.f32 %v2172, %v2162
  %v2174 = vadd.f32 %v2173, %v2163
  %v2175 = vadd.f32 %v2174, %v2164
  %v2176 = vadd.f32 %v2175, %v2165
  %v2177 = vadd.f32 %v2176, %v2166
  %v2178 = vadd.f32 %v2177, %v2167
  %v2179 = vadd.f32 %v2178, %v2168
  %v2180 = vadd.f32 %v2179, %v2169
  %v2181 = vadd.f32 %v2180, %v2170
  %v2182 = vadd.f32 %v2181, %v2171
  %2183 = vadd.xlane.f32.xlu0 %v2182
  %v2184 = vpop.xlane.xlu0 %2183
  %v2185 = vmul.f32 %v2184, 0.0011574074
  %v2186 = vmul.f32 %v2160, %v1739
  %v2187 = vmul.f32 %v2161, %v1741
  %v2188 = vmul.f32 %v2162, %v1810
  %v2189 = vmul.f32 %v2163, %v1812
  %v2190 = vmul.f32 %v2164, %v1881
  %v2191 = vmul.f32 %v2165, %v1883
  %v2192 = vmul.f32 %v2166, %v1952
  %v2193 = vmul.f32 %v2167, %v1954
  %v2194 = vmul.f32 %v2168, %v2023
  %v2195 = vmul.f32 %v2169, %v2025
  %v2196 = vmul.f32 %v2170, %v2094
  %v2197 = vmul.f32 %v2171, %v2096
  %v2198 = vadd.f32 %v2186, %v2187
  %v2199 = vadd.f32 %v2198, %v2188
  %v2200 = vadd.f32 %v2199, %v2189
  %v2201 = vadd.f32 %v2200, %v2190
  %v2202 = vadd.f32 %v2201, %v2191
  %v2203 = vadd.f32 %v2202, %v2192
  %v2204 = vadd.f32 %v2203, %v2193
  %v2205 = vadd.f32 %v2204, %v2194
  %v2206 = vadd.f32 %v2205, %v2195
  %v2207 = vadd.f32 %v2206, %v2196
  %v2208 = vadd.f32 %v2207, %v2197
  %2209 = vadd.xlane.f32.xlu0 %v2208
  %v2210 = vpop.xlane.xlu0 %2209
  %v2211 = vmul.f32 %v2210, 0.0011574074
  %v2212 = vmul.f32 %v2185, %v2185
  %v2213 = vsub.f32 %v2211, %v2212
  %v2214 = vadd.f32 %v2213, 1e-05
  %v2215 = vrsqrt.pop %v2214
  %v2216 = vmul.f32 %v1161, %v2215
  %v2217 = vmul.f32 %v2185, %v2216
  %v2218 = vsub.f32 %v1162, %v2217
  %2220 = vset.pattern.permute.xlu0 0
  %2221 = vperm.xlu0 %2220, %v2216
  %v2222 = vpop.permute.xlu0 %2221
  %v2224 = vmul.f32 %v1739, %v2222
  %v2225 = vmul.f32 %v1741, %v2222
  %v2226 = vmul.f32 %v1810, %v2222
  %v2227 = vmul.f32 %v1812, %v2222
  %v2228 = vmul.f32 %v1881, %v2222
  %v2229 = vmul.f32 %v1883, %v2222
  %v2230 = vmul.f32 %v1952, %v2222
  %v2231 = vmul.f32 %v1954, %v2222
  %v2232 = vmul.f32 %v2023, %v2222
  %v2233 = vmul.f32 %v2025, %v2222
  %v2234 = vmul.f32 %v2094, %v2222
  %v2235 = vmul.f32 %v2096, %v2222
  %2237 = vset.pattern.permute.xlu0 0
  %2238 = vperm.xlu0 %2237, %v2218
  %v2239 = vpop.permute.xlu0 %2238
  %v2241 = vadd.f32 %v2224, %v2239
  %v2242 = vadd.f32 %v2225, %v2239
  %v2243 = vadd.f32 %v2226, %v2239
  %v2244 = vadd.f32 %v2227, %v2239
  %v2245 = vadd.f32 %v2228, %v2239
  %v2246 = vadd.f32 %v2229, %v2239
  %v2247 = vadd.f32 %v2230, %v2239
  %v2248 = vadd.f32 %v2231, %v2239
  %v2249 = vadd.f32 %v2232, %v2239
  %v2250 = vadd.f32 %v2233, %v2239
  %v2251 = vadd.f32 %v2234, %v2239
  %v2252 = vadd.f32 %v2235, %v2239
  %v2253 = vmax.f32 %v2241, 0.0
  %v2254 = vmax.f32 %v2242, 0.0
  %v2255 = vmax.f32 %v2243, 0.0
  %v2256 = vmax.f32 %v2244, 0.0
  %v2257 = vmax.f32 %v2245, 0.0
  %v2258 = vmax.f32 %v2246, 0.0
  %v2259 = vmax.f32 %v2247, 0.0
  %v2260 = vmax.f32 %v2248, 0.0
  %v2261 = vmax.f32 %v2249, 0.0
  %v2262 = vmax.f32 %v2250, 0.0
  %v2263 = vmax.f32 %v2251, 0.0
  %v2264 = vmax.f32 %v2252, 0.0
  %2265 = vst [vmem:[%s9] sm:$0xff] %v2253
  %2266 = vst [vmem:[%s9 + $0x8] sm:$0xff] %v2254
  %2267 = vst [vmem:[%s9 + $0x10] sm:$0xff] %v2255
  %2268 = vst [vmem:[%s9 + $0x18] sm:$0xff] %v2256
  %2269 = vst [vmem:[%s9 + $0x20] sm:$0xff] %v2257
  %2270 = vst [vmem:[%s9 + $0x28] sm:$0xff] %v2258
  %2271 = vst [vmem:[%s9 + $0x30] sm:$0xff] %v2259
  %2272 = vst [vmem:[%s9 + $0x38] sm:$0xff] %v2260
  %2273 = vst [vmem:[%s9 + $0x40] sm:$0xff] %v2261
  %2274 = vst [vmem:[%s9 + $0x48] sm:$0xff] %v2262
  %2275 = vst [vmem:[%s9 + $0x50] sm:$0xff] %v2263
  %2276 = vst [vmem:[%s9 + $0x58] sm:$0xff] %v2264
  // Predicated region
  $region38: #{block_forward.1} parent=0 // pred_check
    _
  $region39: #{block_forward.1} parent=0 // pred_check_branch
    %2278 = sbr.rel (0) target = $region41
  $region40: #{block_forward.1} parent=0 // pred_region
    _
  $region41: #{block_forward.1} parent=0 // pred_fallthru
    _
  // Predicated region
  $region42: #{block_forward.1} parent=0 // pred_check
    _
  $region43: #{block_forward.1} parent=0 // pred_check_branch
    %2280 = sbr.rel (0) target = $region45
  $region44: #{block_forward.1} parent=0 // pred_region
    _
  $region45: #{block_forward.1} parent=0 // pred_fallthru
    _

</llo_original>
